<compile_context>
chip_gen: v5e
topology: v5e:2x2
jax: 0.10.0
libtpu: 0.0.40
codegen_flags: <defaults>
</compile_context>

<pallas_src>
import functools

import jax
import jax.numpy as jnp
from jax.experimental import pallas as pl
from jax.experimental.pallas import tpu as pltpu

BN_EPS = 1e-5
_CONV_DIMS = [(1, 2), (2, 4), (4, 8), (8, 16), (16, 32), (32, 64), (64, 64)]


# ---------------------------------------------------------------------------
# Kernel
# ---------------------------------------------------------------------------
def net_kernel(x_ref,
               a1, c1, a2, c2, a3, c3, a4, c4, a5, c5, a6, c6, a7, c7,
               wf1, bf1, wf2, bf2,
               out_ref, acc_ref, *, g_valid):
    """One (batch b, group-tile t) grid step.

    x_ref   : (64, GT)  bit-reversed fine positions x coarse-group columns
    a*/c*   : Kronecker-expanded pointwise-conv weights / bias columns
    wf1/wf2 : fc weights in (out, in) layout; bf1/bf2 as (out, 1) columns
    out_ref : (16, 1)   logits column for batch element b
    acc_ref : (64, 1)   running per-channel max over group columns
    """
    t = pl.program_id(1)
    gt = x_ref.shape[-1]

    def conv_relu(h, a_ref, c_ref):
        y = jnp.dot(a_ref[...], h, preferred_element_type=jnp.float32)
        return jnp.maximum(y + c_ref[...], 0.0)

    def pool(h):
        # MaxPool1d(2): fine axis is bit-reversed, so partners sit exactly one
        # half-slab apart -> aligned sublane-block slices, pure VPU max.
        half = h.shape[0] // 2
        return jnp.maximum(h[:half, :], h[half:, :])

    h = x_ref[...]                               # (64, GT)
    h = pool(conv_relu(h, a1, c1))               # conv1 (+folded BN) + relu
    h = pool(conv_relu(h, a2, c2))
    h = pool(conv_relu(h, a3, c3))
    h = pool(conv_relu(h, a4, c4))
    h = pool(conv_relu(h, a5, c5))
    h = pool(conv_relu(h, a6, c6))
    h = conv_relu(h, a7, c7)                     # (64, GT): channels x groups

    # x.max(2): mask padded group columns, reduce this tile over lanes.
    col = t * gt + jax.lax.broadcasted_iota(jnp.int32, h.shape, 1)
    h = jnp.where(col < g_valid, h, -jnp.inf)
    tile_max = jnp.max(h, axis=1, keepdims=True)  # (64, 1)

    @pl.when(t == 0)
    def _init():
        acc_ref[...] = jnp.full(acc_ref.shape, -jnp.inf, acc_ref.dtype)

    acc_ref[...] = jnp.maximum(acc_ref[...], tile_max)

    @pl.when(t == pl.num_programs(1) - 1)
    def _finalize():                              # fused fc1 + relu + fc2
        v = acc_ref[...]                          # (64, 1)
        z = jnp.dot(wf1[...], v, preferred_element_type=jnp.float32) + bf1[...]
        z = jnp.maximum(z, 0.0)                   # (64, 1)
        o = jnp.dot(wf2[...], z, preferred_element_type=jnp.float32) + bf2[...]
        out_ref[...] = o.astype(out_ref.dtype)    # (16, 1)


# ---------------------------------------------------------------------------
# Wrapper-side layout plumbing (plain JAX, cheap)
# ---------------------------------------------------------------------------
def _bit_reversed_64():
    return [int(format(i, "06b")[::-1], 2) for i in range(64)]


def _kernel_operands(x, params):
    """Fold BN into conv1, Kronecker-expand the pointwise convs, reorder x."""
    B, L = x.shape
    G = L // 64
    f32 = jnp.float32

    # BN(conv1) fold: conv1 is affine in x, so the training-mode batch stats
    # are scalar functions of mean(x)/var(x) (hoisted here; keeps tiling legal).
    w1 = params["conv1_w"][:, 0]                  # (2,)
    mx = jnp.mean(x)
    vx = jnp.mean(jnp.square(x - mx))             # biased variance
    inv = 1.0 / jnp.sqrt(w1 * w1 * vx + BN_EPS)
    scale = w1 * params["bn1_g"] * inv            # (2,)
    shift = params["bn1_b"] - scale * mx          # (2,)  (conv1 bias cancels)

    # Block-diagonal (I_F ⊗ W) weights: row/col index = fine*C + channel.
    mats, cols = [], []
    fine = 64
    w_eff = [scale.reshape(2, 1)] + [params[f"conv{k}_w"] for k in range(2, 8)]
    b_eff = [shift] + [params[f"conv{k}_b"] for k in range(2, 8)]
    for w, b in zip(w_eff, b_eff):
        mats.append(jnp.kron(jnp.eye(fine, dtype=f32), w.astype(f32)))
        cols.append(jnp.tile(b.astype(f32), fine).reshape(-1, 1))
        fine //= 2

    wf1 = params["fc1_w"].astype(f32)             # (64, 64)  (out, in)
    bf1 = params["fc1_b"].astype(f32).reshape(64, 1)
    wf2 = params["fc2_w"].astype(f32)             # (16, 64)
    bf2 = params["fc2_b"].astype(f32).reshape(16, 1)

    # Input slab (B, 64, G): fine axis in bit-reversed order so each pool stage
    # is max(first half rows, second half rows).
    perm = jnp.array(_bit_reversed_64(), dtype=jnp.int32)
    x_slab = jnp.transpose(x.reshape(B, G, 64)[:, :, perm], (0, 2, 1))

    return x_slab, mats, cols, (wf1, bf1, wf2, bf2)


def net_forward(x, params, *, gt_max=512):
    """x: (B, L) float32 with L % 64 == 0  ->  (B, 16) float32."""
    B, L = x.shape
    assert L % 64 == 0, "length must be divisible by 64 (six MaxPool1d(2) stages)"
    G = L // 64

    x_slab, mats, cols, (wf1, bf1, wf2, bf2) = _kernel_operands(x, params)

    # Lane tile over the coarse-group axis.
    if G <= gt_max:
        gt, gp = G, G                              # single full-width tile
    else:
        assert gt_max % 128 == 0, "gt_max must be a multiple of 128"
        gt = gt_max
        gp = pl.cdiv(G, gt) * gt
        x_slab = jnp.pad(x_slab, ((0, 0), (0, 0), (0, gp - G)))
    n_t = gp // gt

    operands = [x_slab]
    in_specs = [pl.BlockSpec((None, 64, gt), lambda b, t: (b, 0, t))]

    def _const_spec(a):                            # small weights stay resident
        return pl.BlockSpec(a.shape, lambda b, t: (0, 0))

    for a, c in zip(mats, cols):
        operands += [a, c]
        in_specs += [_const_spec(a), _const_spec(c)]
    for a in (wf1, bf1, wf2, bf2):
        operands.append(a)
        in_specs.append(_const_spec(a))

    flops = 2 * B * gp * (6 * 128 * 64 + 64 * 64) + 2 * B * (64 * 64 + 16 * 64)
    bytes_accessed = 4 * (int(x_slab.size)
                          + sum(int(a.size) for a in operands[1:])
                          + B * 16)

    out = pl.pallas_call(
        functools.partial(net_kernel, g_valid=G),
        out_shape=jax.ShapeDtypeStruct((B, 16, 1), jnp.float32),
        grid_spec=pltpu.PrefetchScalarGridSpec(
            num_scalar_prefetch=0,
            grid=(B, n_t),
            in_specs=in_specs,
            out_specs=pl.BlockSpec((None, 16, 1), lambda b, t: (b, 0, 0)),
            scratch_shapes=[pltpu.VMEM((64, 1), jnp.float32)],
        ),
        compiler_params=pltpu.CompilerParams(
            dimension_semantics=("parallel", "arbitrary"),
            vmem_limit_bytes=32 * 1024 * 1024,
        ),
        cost_estimate=pl.CostEstimate(
            flops=flops, transcendentals=0, bytes_accessed=bytes_accessed),
    )(*operands)
    return out.reshape(B, 16)


# ---------------------------------------------------------------------------
# Parameters (native PyTorch layouts) and pure-JAX reference
# ---------------------------------------------------------------------------
def init_params(key):
    params = {}
    keys = jax.random.split(key, 2 * len(_CONV_DIMS) + 4)
    i = 0
    for idx, (cin, cout) in enumerate(_CONV_DIMS, start=1):
        bound = 1.0 / (cin ** 0.5)                 # kernel_size = 1
        params[f"conv{idx}_w"] = jax.random.uniform(
            keys[i], (cout, cin), jnp.float32, -bound, bound); i += 1
        params[f"conv{idx}_b"] = jax.random.uniform(
            keys[i], (cout,), jnp.float32, -bound, bound); i += 1
    params["bn1_g"] = jnp.ones((2,), jnp.float32)  # PyTorch default affine init
    params["bn1_b"] = jnp.zeros((2,), jnp.float32)
    bound = 1.0 / (64 ** 0.5)
    params["fc1_w"] = jax.random.uniform(keys[i], (64, 64), jnp.float32, -bound, bound); i += 1
    params["fc1_b"] = jax.random.uniform(keys[i], (64,), jnp.float32, -bound, bound); i += 1
    params["fc2_w"] = jax.random.uniform(keys[i], (16, 64), jnp.float32, -bound, bound); i += 1
    params["fc2_b"] = jax.random.uniform(keys[i], (16,), jnp.float32, -bound, bound); i += 1
    return params


def net_forward_ref(x, params):
    """Pure-JAX reference mirroring the PyTorch forward (training-mode BN)."""
    def pool(h):
        b, c, l = h.shape
        return jnp.max(h.reshape(b, c, l // 2, 2), axis=3)

    h = (x[:, None, :] * params["conv1_w"][:, 0][None, :, None]
         + params["conv1_b"][None, :, None])                     # (B, 2, L)
    mean = jnp.mean(h, axis=(0, 2), keepdims=True)
    var = jnp.mean(jnp.square(h - mean), axis=(0, 2), keepdims=True)
    h = (h - mean) / jnp.sqrt(var + BN_EPS)
    h = h * params["bn1_g"][None, :, None] + params["bn1_b"][None, :, None]
    h = jnp.maximum(h, 0.0)
    h = pool(h)
    for k in range(2, 8):
        h = (jnp.einsum("oc,bcl->bol", params[f"conv{k}_w"], h)
             + params[f"conv{k}_b"][None, :, None])
        h = jnp.maximum(h, 0.0)
        if k < 7:
            h = pool(h)
    feat = jnp.max(h, axis=2)                                     # (B, 64)
    feat = jnp.maximum(feat @ params["fc1_w"].T + params["fc1_b"], 0.0)
    return feat @ params["fc2_w"].T + params["fc2_b"]


if __name__ == "__main__":
    key = jax.random.PRNGKey(0)
    kp, kx1, kx2 = jax.random.split(key, 3)
    params = init_params(kp)

    # Case 1: module-default signal length (n_peaks = 256), single lane tile.
    x1 = jax.random.normal(kx1, (2, 256), jnp.float32)
    out1 = jax.block_until_ready(net_forward(x1, params))
    ref1 = jax.block_until_ready(net_forward_ref(x1, params))
    assert out1.shape == (2, 16), out1.shape
    assert jnp.allclose(out1, ref1, atol=2e-4, rtol=2e-4), (out1, ref1)

    # Case 2: longer input exercising the pipelined grid (two 128-wide group
    # tiles, the last one half padded/masked) and the cross-tile max accumulator.
    x2 = jax.random.normal(kx2, (3, 64 * 192), jnp.float32)
    out2 = jax.block_until_ready(net_forward(x2, params, gt_max=128))
    ref2 = jax.block_until_ready(net_forward_ref(x2, params))
    assert out2.shape == (3, 16), out2.shape
    assert jnp.allclose(out2, ref2, atol=2e-4, rtol=2e-4), (out2, ref2)

    print("KERNEL_OK")
</pallas_src>

<mosaic_0001>
module attributes {stable_mosaic.version = 11 : i64} {
  func.func @net_kernel(%arg0: i32, %arg1: i32, %arg2: memref<1x64x4xf32, #tpu.memory_space<vmem>>, %arg3: memref<128x64xf32, #tpu.memory_space<vmem>>, %arg4: memref<128x1xf32, #tpu.memory_space<vmem>>, %arg5: memref<128x64xf32, #tpu.memory_space<vmem>>, %arg6: memref<128x1xf32, #tpu.memory_space<vmem>>, %arg7: memref<128x64xf32, #tpu.memory_space<vmem>>, %arg8: memref<128x1xf32, #tpu.memory_space<vmem>>, %arg9: memref<128x64xf32, #tpu.memory_space<vmem>>, %arg10: memref<128x1xf32, #tpu.memory_space<vmem>>, %arg11: memref<128x64xf32, #tpu.memory_space<vmem>>, %arg12: memref<128x1xf32, #tpu.memory_space<vmem>>, %arg13: memref<128x64xf32, #tpu.memory_space<vmem>>, %arg14: memref<128x1xf32, #tpu.memory_space<vmem>>, %arg15: memref<64x64xf32, #tpu.memory_space<vmem>>, %arg16: memref<64x1xf32, #tpu.memory_space<vmem>>, %arg17: memref<64x64xf32, #tpu.memory_space<vmem>>, %arg18: memref<64x1xf32, #tpu.memory_space<vmem>>, %arg19: memref<16x64xf32, #tpu.memory_space<vmem>>, %arg20: memref<16x1xf32, #tpu.memory_space<vmem>>, %arg21: memref<1x16x1xf32, #tpu.memory_space<vmem>>, %arg22: memref<64x1xf32, #tpu.memory_space<vmem>>) attributes {dimension_semantics = [#tpu.dimension_semantics<parallel>, #tpu.dimension_semantics<arbitrary>], iteration_bounds = array<i64: 2, 1>, scalar_prefetch = 0 : i64, scratch_operands = 1 : i64, tpu.core_type = #tpu.core_type<tc>, window_params = [{transform_indices = @transform_0, window_bounds = array<i64: 1, 64, 4>}, {pipeline_mode = #tpu.pipeline_mode<synchronous>, transform_indices = @transform_1, window_bounds = array<i64: 128, 64>}, {pipeline_mode = #tpu.pipeline_mode<synchronous>, transform_indices = @transform_2, window_bounds = array<i64: 128, 1>}, {pipeline_mode = #tpu.pipeline_mode<synchronous>, transform_indices = @transform_3, window_bounds = array<i64: 128, 64>}, {pipeline_mode = #tpu.pipeline_mode<synchronous>, transform_indices = @transform_4, window_bounds = array<i64: 128, 1>}, {pipeline_mode = #tpu.pipeline_mode<synchronous>, transform_indices = @transform_5, window_bounds = array<i64: 128, 64>}, {pipeline_mode = #tpu.pipeline_mode<synchronous>, transform_indices = @transform_6, window_bounds = array<i64: 128, 1>}, {pipeline_mode = #tpu.pipeline_mode<synchronous>, transform_indices = @transform_7, window_bounds = array<i64: 128, 64>}, {pipeline_mode = #tpu.pipeline_mode<synchronous>, transform_indices = @transform_8, window_bounds = array<i64: 128, 1>}, {pipeline_mode = #tpu.pipeline_mode<synchronous>, transform_indices = @transform_9, window_bounds = array<i64: 128, 64>}, {pipeline_mode = #tpu.pipeline_mode<synchronous>, transform_indices = @transform_10, window_bounds = array<i64: 128, 1>}, {pipeline_mode = #tpu.pipeline_mode<synchronous>, transform_indices = @transform_11, window_bounds = array<i64: 128, 64>}, {pipeline_mode = #tpu.pipeline_mode<synchronous>, transform_indices = @transform_12, window_bounds = array<i64: 128, 1>}, {pipeline_mode = #tpu.pipeline_mode<synchronous>, transform_indices = @transform_13, window_bounds = array<i64: 64, 64>}, {pipeline_mode = #tpu.pipeline_mode<synchronous>, transform_indices = @transform_14, window_bounds = array<i64: 64, 1>}, {pipeline_mode = #tpu.pipeline_mode<synchronous>, transform_indices = @transform_15, window_bounds = array<i64: 64, 64>}, {pipeline_mode = #tpu.pipeline_mode<synchronous>, transform_indices = @transform_16, window_bounds = array<i64: 64, 1>}, {pipeline_mode = #tpu.pipeline_mode<synchronous>, transform_indices = @transform_17, window_bounds = array<i64: 16, 64>}, {pipeline_mode = #tpu.pipeline_mode<synchronous>, transform_indices = @transform_18, window_bounds = array<i64: 16, 1>}, {transform_indices = @transform_19, window_bounds = array<i64: 1, 16, 1>}]} {
    %c0 = arith.constant 0 : index
    %c0_0 = arith.constant 0 : index
    %c0_1 = arith.constant 0 : index
    %0 = vector.load %arg2[%c0, %c0_0, %c0_1] : memref<1x64x4xf32, #tpu.memory_space<vmem>>, vector<1x64x4xf32>
    %1 = vector.shape_cast %0 : vector<1x64x4xf32> to vector<64x4xf32>
    %c0_2 = arith.constant 0 : index
    %c0_3 = arith.constant 0 : index
    %2 = vector.load %arg3[%c0_2, %c0_3] : memref<128x64xf32, #tpu.memory_space<vmem>>, vector<128x64xf32>
    %cst = arith.constant dense<0.000000e+00> : vector<128x4xf32>
    %3 = tpu.matmul %2, %1, %cst {dimension_numbers = #tpu.dot_dimension_numbers<[1], [0], [0], [1], [0, 0, 1, 1], [], []>} : vector<128x64xf32>, vector<64x4xf32>, vector<128x4xf32> -> vector<128x4xf32>
    %c0_4 = arith.constant 0 : index
    %c0_5 = arith.constant 0 : index
    %4 = vector.load %arg4[%c0_4, %c0_5] : memref<128x1xf32, #tpu.memory_space<vmem>>, vector<128x1xf32>
    %5 = vector.broadcast %4 : vector<128x1xf32> to vector<128x4xf32>
    %6 = arith.addf %3, %5 : vector<128x4xf32>
    %cst_6 = arith.constant 0.000000e+00 : f32
    %7 = vector.broadcast %cst_6 : f32 to vector<128x4xf32>
    %8 = arith.maximumf %6, %7 : vector<128x4xf32>
    %9 = vector.extract_strided_slice %8 {offsets = [0, 0], sizes = [64, 4], strides = [1, 1]} : vector<128x4xf32> to vector<64x4xf32>
    %10 = vector.extract_strided_slice %8 {offsets = [64, 0], sizes = [64, 4], strides = [1, 1]} : vector<128x4xf32> to vector<64x4xf32>
    %11 = arith.maximumf %9, %10 : vector<64x4xf32>
    %c0_7 = arith.constant 0 : index
    %c0_8 = arith.constant 0 : index
    %12 = vector.load %arg5[%c0_7, %c0_8] : memref<128x64xf32, #tpu.memory_space<vmem>>, vector<128x64xf32>
    %cst_9 = arith.constant dense<0.000000e+00> : vector<128x4xf32>
    %13 = tpu.matmul %12, %11, %cst_9 {dimension_numbers = #tpu.dot_dimension_numbers<[1], [0], [0], [1], [0, 0, 1, 1], [], []>} : vector<128x64xf32>, vector<64x4xf32>, vector<128x4xf32> -> vector<128x4xf32>
    %c0_10 = arith.constant 0 : index
    %c0_11 = arith.constant 0 : index
    %14 = vector.load %arg6[%c0_10, %c0_11] : memref<128x1xf32, #tpu.memory_space<vmem>>, vector<128x1xf32>
    %15 = vector.broadcast %14 : vector<128x1xf32> to vector<128x4xf32>
    %16 = arith.addf %13, %15 : vector<128x4xf32>
    %cst_12 = arith.constant 0.000000e+00 : f32
    %17 = vector.broadcast %cst_12 : f32 to vector<128x4xf32>
    %18 = arith.maximumf %16, %17 : vector<128x4xf32>
    %19 = vector.extract_strided_slice %18 {offsets = [0, 0], sizes = [64, 4], strides = [1, 1]} : vector<128x4xf32> to vector<64x4xf32>
    %20 = vector.extract_strided_slice %18 {offsets = [64, 0], sizes = [64, 4], strides = [1, 1]} : vector<128x4xf32> to vector<64x4xf32>
    %21 = arith.maximumf %19, %20 : vector<64x4xf32>
    %c0_13 = arith.constant 0 : index
    %c0_14 = arith.constant 0 : index
    %22 = vector.load %arg7[%c0_13, %c0_14] : memref<128x64xf32, #tpu.memory_space<vmem>>, vector<128x64xf32>
    %cst_15 = arith.constant dense<0.000000e+00> : vector<128x4xf32>
    %23 = tpu.matmul %22, %21, %cst_15 {dimension_numbers = #tpu.dot_dimension_numbers<[1], [0], [0], [1], [0, 0, 1, 1], [], []>} : vector<128x64xf32>, vector<64x4xf32>, vector<128x4xf32> -> vector<128x4xf32>
    %c0_16 = arith.constant 0 : index
    %c0_17 = arith.constant 0 : index
    %24 = vector.load %arg8[%c0_16, %c0_17] : memref<128x1xf32, #tpu.memory_space<vmem>>, vector<128x1xf32>
    %25 = vector.broadcast %24 : vector<128x1xf32> to vector<128x4xf32>
    %26 = arith.addf %23, %25 : vector<128x4xf32>
    %cst_18 = arith.constant 0.000000e+00 : f32
    %27 = vector.broadcast %cst_18 : f32 to vector<128x4xf32>
    %28 = arith.maximumf %26, %27 : vector<128x4xf32>
    %29 = vector.extract_strided_slice %28 {offsets = [0, 0], sizes = [64, 4], strides = [1, 1]} : vector<128x4xf32> to vector<64x4xf32>
    %30 = vector.extract_strided_slice %28 {offsets = [64, 0], sizes = [64, 4], strides = [1, 1]} : vector<128x4xf32> to vector<64x4xf32>
    %31 = arith.maximumf %29, %30 : vector<64x4xf32>
    %c0_19 = arith.constant 0 : index
    %c0_20 = arith.constant 0 : index
    %32 = vector.load %arg9[%c0_19, %c0_20] : memref<128x64xf32, #tpu.memory_space<vmem>>, vector<128x64xf32>
    %cst_21 = arith.constant dense<0.000000e+00> : vector<128x4xf32>
    %33 = tpu.matmul %32, %31, %cst_21 {dimension_numbers = #tpu.dot_dimension_numbers<[1], [0], [0], [1], [0, 0, 1, 1], [], []>} : vector<128x64xf32>, vector<64x4xf32>, vector<128x4xf32> -> vector<128x4xf32>
    %c0_22 = arith.constant 0 : index
    %c0_23 = arith.constant 0 : index
    %34 = vector.load %arg10[%c0_22, %c0_23] : memref<128x1xf32, #tpu.memory_space<vmem>>, vector<128x1xf32>
    %35 = vector.broadcast %34 : vector<128x1xf32> to vector<128x4xf32>
    %36 = arith.addf %33, %35 : vector<128x4xf32>
    %cst_24 = arith.constant 0.000000e+00 : f32
    %37 = vector.broadcast %cst_24 : f32 to vector<128x4xf32>
    %38 = arith.maximumf %36, %37 : vector<128x4xf32>
    %39 = vector.extract_strided_slice %38 {offsets = [0, 0], sizes = [64, 4], strides = [1, 1]} : vector<128x4xf32> to vector<64x4xf32>
    %40 = vector.extract_strided_slice %38 {offsets = [64, 0], sizes = [64, 4], strides = [1, 1]} : vector<128x4xf32> to vector<64x4xf32>
    %41 = arith.maximumf %39, %40 : vector<64x4xf32>
    %c0_25 = arith.constant 0 : index
    %c0_26 = arith.constant 0 : index
    %42 = vector.load %arg11[%c0_25, %c0_26] : memref<128x64xf32, #tpu.memory_space<vmem>>, vector<128x64xf32>
    %cst_27 = arith.constant dense<0.000000e+00> : vector<128x4xf32>
    %43 = tpu.matmul %42, %41, %cst_27 {dimension_numbers = #tpu.dot_dimension_numbers<[1], [0], [0], [1], [0, 0, 1, 1], [], []>} : vector<128x64xf32>, vector<64x4xf32>, vector<128x4xf32> -> vector<128x4xf32>
    %c0_28 = arith.constant 0 : index
    %c0_29 = arith.constant 0 : index
    %44 = vector.load %arg12[%c0_28, %c0_29] : memref<128x1xf32, #tpu.memory_space<vmem>>, vector<128x1xf32>
    %45 = vector.broadcast %44 : vector<128x1xf32> to vector<128x4xf32>
    %46 = arith.addf %43, %45 : vector<128x4xf32>
    %cst_30 = arith.constant 0.000000e+00 : f32
    %47 = vector.broadcast %cst_30 : f32 to vector<128x4xf32>
    %48 = arith.maximumf %46, %47 : vector<128x4xf32>
    %49 = vector.extract_strided_slice %48 {offsets = [0, 0], sizes = [64, 4], strides = [1, 1]} : vector<128x4xf32> to vector<64x4xf32>
    %50 = vector.extract_strided_slice %48 {offsets = [64, 0], sizes = [64, 4], strides = [1, 1]} : vector<128x4xf32> to vector<64x4xf32>
    %51 = arith.maximumf %49, %50 : vector<64x4xf32>
    %c0_31 = arith.constant 0 : index
    %c0_32 = arith.constant 0 : index
    %52 = vector.load %arg13[%c0_31, %c0_32] : memref<128x64xf32, #tpu.memory_space<vmem>>, vector<128x64xf32>
    %cst_33 = arith.constant dense<0.000000e+00> : vector<128x4xf32>
    %53 = tpu.matmul %52, %51, %cst_33 {dimension_numbers = #tpu.dot_dimension_numbers<[1], [0], [0], [1], [0, 0, 1, 1], [], []>} : vector<128x64xf32>, vector<64x4xf32>, vector<128x4xf32> -> vector<128x4xf32>
    %c0_34 = arith.constant 0 : index
    %c0_35 = arith.constant 0 : index
    %54 = vector.load %arg14[%c0_34, %c0_35] : memref<128x1xf32, #tpu.memory_space<vmem>>, vector<128x1xf32>
    %55 = vector.broadcast %54 : vector<128x1xf32> to vector<128x4xf32>
    %56 = arith.addf %53, %55 : vector<128x4xf32>
    %cst_36 = arith.constant 0.000000e+00 : f32
    %57 = vector.broadcast %cst_36 : f32 to vector<128x4xf32>
    %58 = arith.maximumf %56, %57 : vector<128x4xf32>
    %59 = vector.extract_strided_slice %58 {offsets = [0, 0], sizes = [64, 4], strides = [1, 1]} : vector<128x4xf32> to vector<64x4xf32>
    %60 = vector.extract_strided_slice %58 {offsets = [64, 0], sizes = [64, 4], strides = [1, 1]} : vector<128x4xf32> to vector<64x4xf32>
    %61 = arith.maximumf %59, %60 : vector<64x4xf32>
    %c0_37 = arith.constant 0 : index
    %c0_38 = arith.constant 0 : index
    %62 = vector.load %arg15[%c0_37, %c0_38] : memref<64x64xf32, #tpu.memory_space<vmem>>, vector<64x64xf32>
    %cst_39 = arith.constant dense<0.000000e+00> : vector<64x4xf32>
    %63 = tpu.matmul %62, %61, %cst_39 {dimension_numbers = #tpu.dot_dimension_numbers<[1], [0], [0], [1], [0, 0, 1, 1], [], []>} : vector<64x64xf32>, vector<64x4xf32>, vector<64x4xf32> -> vector<64x4xf32>
    %c0_40 = arith.constant 0 : index
    %c0_41 = arith.constant 0 : index
    %64 = vector.load %arg16[%c0_40, %c0_41] : memref<64x1xf32, #tpu.memory_space<vmem>>, vector<64x1xf32>
    %65 = vector.broadcast %64 : vector<64x1xf32> to vector<64x4xf32>
    %66 = arith.addf %63, %65 : vector<64x4xf32>
    %cst_42 = arith.constant 0.000000e+00 : f32
    %67 = vector.broadcast %cst_42 : f32 to vector<64x4xf32>
    %68 = arith.maximumf %66, %67 : vector<64x4xf32>
    %c4_i32 = arith.constant 4 : i32
    %69 = arith.muli %arg1, %c4_i32 : i32
    %70 = tpu.iota {dimensions = array<i32: 1>} : vector<64x4xi32>
    %71 = vector.broadcast %69 : i32 to vector<64x4xi32>
    %72 = arith.addi %71, %70 : vector<64x4xi32>
    %c4_i32_43 = arith.constant 4 : i32
    %73 = vector.broadcast %c4_i32_43 : i32 to vector<64x4xi32>
    %74 = arith.cmpi slt, %72, %73 : vector<64x4xi32>
    %cst_44 = arith.constant 0xFF800000 : f32
    %75 = vector.broadcast %cst_44 : f32 to vector<64x4xf32>
    %76 = arith.select %74, %68, %75 : vector<64x4xi1>, vector<64x4xf32>
    %cst_45 = arith.constant dense<0xFF800000> : vector<64xf32>
    %77 = vector.multi_reduction <maximumf>, %76, %cst_45 [1] : vector<64x4xf32> to vector<64xf32>
    %78 = vector.shape_cast %77 : vector<64xf32> to vector<64x1xf32>
    %c0_i32 = arith.constant 0 : i32
    %79 = arith.cmpi eq, %arg1, %c0_i32 : i32
    %80 = arith.extui %79 : i1 to i32
    %c0_i32_46 = arith.constant 0 : i32
    %81 = arith.cmpi ne, %80, %c0_i32_46 : i32
    scf.if %81 {
      %cst_53 = arith.constant 0xFF800000 : f32
      %88 = vector.broadcast %cst_53 : f32 to vector<64x1xf32>
      %c0_54 = arith.constant 0 : index
      %c0_55 = arith.constant 0 : index
      %89 = vector.load %arg22[%c0_54, %c0_55] : memref<64x1xf32, #tpu.memory_space<vmem>>, vector<64x1xf32>
      tpu.vector_store %arg22[%c0_54, %c0_55], %88 {strides = array<i32>} : memref<64x1xf32, #tpu.memory_space<vmem>>, vector<64x1xf32>,
    } else {
    }
    %c0_47 = arith.constant 0 : index
    %c0_48 = arith.constant 0 : index
    %82 = vector.load %arg22[%c0_47, %c0_48] : memref<64x1xf32, #tpu.memory_space<vmem>>, vector<64x1xf32>
    %83 = arith.maximumf %82, %78 : vector<64x1xf32>
    %c0_49 = arith.constant 0 : index
    %c0_50 = arith.constant 0 : index
    %84 = vector.load %arg22[%c0_49, %c0_50] : memref<64x1xf32, #tpu.memory_space<vmem>>, vector<64x1xf32>
    tpu.vector_store %arg22[%c0_49, %c0_50], %83 {strides = array<i32>} : memref<64x1xf32, #tpu.memory_space<vmem>>, vector<64x1xf32>,
    %c0_i32_51 = arith.constant 0 : i32
    %85 = arith.cmpi eq, %arg1, %c0_i32_51 : i32
    %86 = arith.extui %85 : i1 to i32
    %c0_i32_52 = arith.constant 0 : i32
    %87 = arith.cmpi ne, %86, %c0_i32_52 : i32
    scf.if %87 {
      %c0_53 = arith.constant 0 : index
      %c0_54 = arith.constant 0 : index
      %88 = vector.load %arg22[%c0_53, %c0_54] : memref<64x1xf32, #tpu.memory_space<vmem>>, vector<64x1xf32>
      %c0_55 = arith.constant 0 : index
      %c0_56 = arith.constant 0 : index
      %89 = vector.load %arg17[%c0_55, %c0_56] : memref<64x64xf32, #tpu.memory_space<vmem>>, vector<64x64xf32>
      %cst_57 = arith.constant dense<0.000000e+00> : vector<64x1xf32>
      %90 = tpu.matmul %89, %88, %cst_57 {dimension_numbers = #tpu.dot_dimension_numbers<[1], [0], [0], [1], [0, 0, 1, 1], [], []>} : vector<64x64xf32>, vector<64x1xf32>, vector<64x1xf32> -> vector<64x1xf32>
      %c0_58 = arith.constant 0 : index
      %c0_59 = arith.constant 0 : index
      %91 = vector.load %arg18[%c0_58, %c0_59] : memref<64x1xf32, #tpu.memory_space<vmem>>, vector<64x1xf32>
      %92 = arith.addf %90, %91 : vector<64x1xf32>
      %cst_60 = arith.constant 0.000000e+00 : f32
      %93 = vector.broadcast %cst_60 : f32 to vector<64x1xf32>
      %94 = arith.maximumf %92, %93 : vector<64x1xf32>
      %c0_61 = arith.constant 0 : index
      %c0_62 = arith.constant 0 : index
      %95 = vector.load %arg19[%c0_61, %c0_62] : memref<16x64xf32, #tpu.memory_space<vmem>>, vector<16x64xf32>
      %cst_63 = arith.constant dense<0.000000e+00> : vector<16x1xf32>
      %96 = tpu.matmul %95, %94, %cst_63 {dimension_numbers = #tpu.dot_dimension_numbers<[1], [0], [0], [1], [0, 0, 1, 1], [], []>} : vector<16x64xf32>, vector<64x1xf32>, vector<16x1xf32> -> vector<16x1xf32>
      %c0_64 = arith.constant 0 : index
      %c0_65 = arith.constant 0 : index
      %97 = vector.load %arg20[%c0_64, %c0_65] : memref<16x1xf32, #tpu.memory_space<vmem>>, vector<16x1xf32>
      %98 = arith.addf %96, %97 : vector<16x1xf32>
      %c0_66 = arith.constant 0 : index
      %c0_67 = arith.constant 0 : index
      %c0_68 = arith.constant 0 : index
      %99 = vector.load %arg21[%c0_66, %c0_67, %c0_68] : memref<1x16x1xf32, #tpu.memory_space<vmem>>, vector<1x16x1xf32>
      %100 = vector.shape_cast %99 : vector<1x16x1xf32> to vector<16x1xf32>
      %101 = vector.shape_cast %98 : vector<16x1xf32> to vector<1x16x1xf32>
      tpu.vector_store %arg21[%c0_66, %c0_67, %c0_68], %101 {strides = array<i32>} : memref<1x16x1xf32, #tpu.memory_space<vmem>>, vector<1x16x1xf32>,
    } else {
    }
    return
  }
  func.func @transform_0(%arg0: i32, %arg1: i32) -> (i32, i32, i32) {
    %c0_i32 = arith.constant 0 : i32
    %c0_i32_0 = arith.constant 0 : i32
    return %arg0, %c0_i32, %arg1 : i32, i32, i32
  }
  func.func @transform_1(%arg0: i32, %arg1: i32) -> (i32, i32) {
    %c0_i32 = arith.constant 0 : i32
    %c0_i32_0 = arith.constant 0 : i32
    %c0_i32_1 = arith.constant 0 : i32
    return %c0_i32, %c0_i32_0 : i32, i32
  }
  func.func @transform_2(%arg0: i32, %arg1: i32) -> (i32, i32) {
    %c0_i32 = arith.constant 0 : i32
    %c0_i32_0 = arith.constant 0 : i32
    %c0_i32_1 = arith.constant 0 : i32
    return %c0_i32, %c0_i32_0 : i32, i32
  }
  func.func @transform_3(%arg0: i32, %arg1: i32) -> (i32, i32) {
    %c0_i32 = arith.constant 0 : i32
    %c0_i32_0 = arith.constant 0 : i32
    %c0_i32_1 = arith.constant 0 : i32
    return %c0_i32, %c0_i32_0 : i32, i32
  }
  func.func @transform_4(%arg0: i32, %arg1: i32) -> (i32, i32) {
    %c0_i32 = arith.constant 0 : i32
    %c0_i32_0 = arith.constant 0 : i32
    %c0_i32_1 = arith.constant 0 : i32
    return %c0_i32, %c0_i32_0 : i32, i32
  }
  func.func @transform_5(%arg0: i32, %arg1: i32) -> (i32, i32) {
    %c0_i32 = arith.constant 0 : i32
    %c0_i32_0 = arith.constant 0 : i32
    %c0_i32_1 = arith.constant 0 : i32
    return %c0_i32, %c0_i32_0 : i32, i32
  }
  func.func @transform_6(%arg0: i32, %arg1: i32) -> (i32, i32) {
    %c0_i32 = arith.constant 0 : i32
    %c0_i32_0 = arith.constant 0 : i32
    %c0_i32_1 = arith.constant 0 : i32
    return %c0_i32, %c0_i32_0 : i32, i32
  }
  func.func @transform_7(%arg0: i32, %arg1: i32) -> (i32, i32) {
    %c0_i32 = arith.constant 0 : i32
    %c0_i32_0 = arith.constant 0 : i32
    %c0_i32_1 = arith.constant 0 : i32
    return %c0_i32, %c0_i32_0 : i32, i32
  }
  func.func @transform_8(%arg0: i32, %arg1: i32) -> (i32, i32) {
    %c0_i32 = arith.constant 0 : i32
    %c0_i32_0 = arith.constant 0 : i32
    %c0_i32_1 = arith.constant 0 : i32
    return %c0_i32, %c0_i32_0 : i32, i32
  }
  func.func @transform_9(%arg0: i32, %arg1: i32) -> (i32, i32) {
    %c0_i32 = arith.constant 0 : i32
    %c0_i32_0 = arith.constant 0 : i32
    %c0_i32_1 = arith.constant 0 : i32
    return %c0_i32, %c0_i32_0 : i32, i32
  }
  func.func @transform_10(%arg0: i32, %arg1: i32) -> (i32, i32) {
    %c0_i32 = arith.constant 0 : i32
    %c0_i32_0 = arith.constant 0 : i32
    %c0_i32_1 = arith.constant 0 : i32
    return %c0_i32, %c0_i32_0 : i32, i32
  }
  func.func @transform_11(%arg0: i32, %arg1: i32) -> (i32, i32) {
    %c0_i32 = arith.constant 0 : i32
    %c0_i32_0 = arith.constant 0 : i32
    %c0_i32_1 = arith.constant 0 : i32
    return %c0_i32, %c0_i32_0 : i32, i32
  }
  func.func @transform_12(%arg0: i32, %arg1: i32) -> (i32, i32) {
    %c0_i32 = arith.constant 0 : i32
    %c0_i32_0 = arith.constant 0 : i32
    %c0_i32_1 = arith.constant 0 : i32
    return %c0_i32, %c0_i32_0 : i32, i32
  }
  func.func @transform_13(%arg0: i32, %arg1: i32) -> (i32, i32) {
    %c0_i32 = arith.constant 0 : i32
    %c0_i32_0 = arith.constant 0 : i32
    %c0_i32_1 = arith.constant 0 : i32
    return %c0_i32, %c0_i32_0 : i32, i32
  }
  func.func @transform_14(%arg0: i32, %arg1: i32) -> (i32, i32) {
    %c0_i32 = arith.constant 0 : i32
    %c0_i32_0 = arith.constant 0 : i32
    %c0_i32_1 = arith.constant 0 : i32
    return %c0_i32, %c0_i32_0 : i32, i32
  }
  func.func @transform_15(%arg0: i32, %arg1: i32) -> (i32, i32) {
    %c0_i32 = arith.constant 0 : i32
    %c0_i32_0 = arith.constant 0 : i32
    %c0_i32_1 = arith.constant 0 : i32
    return %c0_i32, %c0_i32_0 : i32, i32
  }
  func.func @transform_16(%arg0: i32, %arg1: i32) -> (i32, i32) {
    %c0_i32 = arith.constant 0 : i32
    %c0_i32_0 = arith.constant 0 : i32
    %c0_i32_1 = arith.constant 0 : i32
    return %c0_i32, %c0_i32_0 : i32, i32
  }
  func.func @transform_17(%arg0: i32, %arg1: i32) -> (i32, i32) {
    %c0_i32 = arith.constant 0 : i32
    %c0_i32_0 = arith.constant 0 : i32
    %c0_i32_1 = arith.constant 0 : i32
    return %c0_i32, %c0_i32_0 : i32, i32
  }
  func.func @transform_18(%arg0: i32, %arg1: i32) -> (i32, i32) {
    %c0_i32 = arith.constant 0 : i32
    %c0_i32_0 = arith.constant 0 : i32
    %c0_i32_1 = arith.constant 0 : i32
    return %c0_i32, %c0_i32_0 : i32, i32
  }
  func.func @transform_19(%arg0: i32, %arg1: i32) -> (i32, i32, i32) {
    %c0_i32 = arith.constant 0 : i32
    %c0_i32_0 = arith.constant 0 : i32
    %c0_i32_1 = arith.constant 0 : i32
    return %arg0, %c0_i32, %c0_i32_0 : i32, i32, i32
  }
}

</mosaic_0001>

<llo_original>
// kernel: tpu_custom_call.1
$region0: #{tpu_custom_call.1}
  #allocation0 [shape = 'u32[]', space=smem, size = 0x4, offset = 0x4, fixed_abs, tag = 'smem constant byte address 0x4 - core index']
  #allocation1 [shape = 'u32[72,128]{1,0:T(1,128)}', space=vmem, size = 0x9000, scoped, tag = 'internal scratch']
  #allocation2 [shape = 'f32[64,1]{1,0:T(8,128)}', space=vmem, size = 0x8000, scoped, tag = 'scratch operand']
  %s0 = inlined_call_operand.vmem [shape: f32[2,64,4], index: 0, kind: input, shape index: {}]
  %s1 = inlined_call_operand.vmem [shape: f32[128,64], index: 1, kind: input, shape index: {}]
  %s2 = inlined_call_operand.vmem [shape: f32[128,1], index: 2, kind: input, shape index: {}]
  %s3 = inlined_call_operand.vmem [shape: f32[128,64], index: 3, kind: input, shape index: {}]
  %s4 = inlined_call_operand.vmem [shape: f32[128,1], index: 4, kind: input, shape index: {}]
  %s5 = inlined_call_operand.vmem [shape: f32[128,64], index: 5, kind: input, shape index: {}]
  %s6 = inlined_call_operand.vmem [shape: f32[128,1], index: 6, kind: input, shape index: {}]
  %s7 = inlined_call_operand.vmem [shape: f32[128,64], index: 7, kind: input, shape index: {}]
  %s8 = inlined_call_operand.vmem [shape: f32[128,1], index: 8, kind: input, shape index: {}]
  %s9 = inlined_call_operand.vmem [shape: f32[128,64], index: 9, kind: input, shape index: {}]
  %s10 = inlined_call_operand.vmem [shape: f32[128,1], index: 10, kind: input, shape index: {}]
  %s11 = inlined_call_operand.vmem [shape: f32[128,64], index: 11, kind: input, shape index: {}]
  %s12 = inlined_call_operand.vmem [shape: f32[128,1], index: 12, kind: input, shape index: {}]
  %s13 = inlined_call_operand.vmem [shape: f32[64,64], index: 13, kind: input, shape index: {}]
  %s14 = inlined_call_operand.vmem [shape: f32[64,1], index: 14, kind: input, shape index: {}]
  %s15 = inlined_call_operand.vmem [shape: f32[64,64], index: 15, kind: input, shape index: {}]
  %s16 = inlined_call_operand.vmem [shape: f32[64,1], index: 16, kind: input, shape index: {}]
  %s17 = inlined_call_operand.vmem [shape: f32[16,64], index: 17, kind: input, shape index: {}]
  %s18 = inlined_call_operand.vmem [shape: f32[16,1], index: 18, kind: input, shape index: {}]
  %s19 = inlined_call_operand.vmem [shape: f32[2,16,1], index: 19, kind: output, shape index: {}]
  %s20 = sld [smem:[#allocation0]]
  $region117: #{tpu_custom_call.1} parent=0
    _
  %s22 = ssub.s32 1, %s20
  %s23 = scalar_select 0, %s22, %s20
  loop: start=0, step=1, limit=4
  $region2: #{tpu_custom_call.1} parent=0 // loop_pre_header
    _
  $region3: #{tpu_custom_call.1} parent=0 // loop_header
    %s25 = sphi 0, %s29
    %p26 = scmp.ge.s32.totalorder %s25, 4
    %s32 = sphi 0, %s44
    %s33 = sphi 0, %s40
    %s34 = sphi 0, %s32
    %s35 = sphi 0, %s33
    %s36 = sphi 0, %s34
    %s37 = sphi 0, %s35
    %s49 = sphi 0, %s51
    %s52 = sphi 0, %s49
    %s53 = sphi 0, %s52
    %s69 = sphi 0, %s53
    %s73 = sphi 0, %s73
    %s75 = sphi 0, %s73
    %s76 = sphi 0, %s75
    %s90 = sphi 0, %s76
    %s94 = sphi 0, %s94
    %s96 = sphi 0, %s94
    %s97 = sphi 0, %s96
    %s111 = sphi 0, %s97
    %s115 = sphi 0, %s115
    %s117 = sphi 0, %s115
    %s118 = sphi 0, %s117
    %s132 = sphi 0, %s118
    %s136 = sphi 0, %s136
    %s138 = sphi 0, %s136
    %s139 = sphi 0, %s138
    %s153 = sphi 0, %s139
    %s157 = sphi 0, %s157
    %s159 = sphi 0, %s157
    %s160 = sphi 0, %s159
    %s174 = sphi 0, %s160
    %s178 = sphi 0, %s178
    %s180 = sphi 0, %s178
    %s181 = sphi 0, %s180
    %s195 = sphi 0, %s181
    %s199 = sphi 0, %s199
    %s201 = sphi 0, %s199
    %s202 = sphi 0, %s201
    %s216 = sphi 0, %s202
    %s220 = sphi 0, %s220
    %s222 = sphi 0, %s220
    %s223 = sphi 0, %s222
    %s237 = sphi 0, %s223
    %s241 = sphi 0, %s241
    %s243 = sphi 0, %s241
    %s244 = sphi 0, %s243
    %s258 = sphi 0, %s244
    %s262 = sphi 0, %s262
    %s264 = sphi 0, %s262
    %s265 = sphi 0, %s264
    %s279 = sphi 0, %s265
    %s283 = sphi 0, %s283
    %s285 = sphi 0, %s283
    %s286 = sphi 0, %s285
    %s300 = sphi 0, %s286
    %s304 = sphi 0, %s304
    %s306 = sphi 0, %s304
    %s307 = sphi 0, %s306
    %s321 = sphi 0, %s307
    %s325 = sphi 0, %s325
    %s327 = sphi 0, %s325
    %s328 = sphi 0, %s327
    %s342 = sphi 0, %s328
    %s346 = sphi 0, %s346
    %s348 = sphi 0, %s346
    %s349 = sphi 0, %s348
    %s363 = sphi 0, %s349
    %s367 = sphi 0, %s367
    %s369 = sphi 0, %s367
    %s370 = sphi 0, %s369
    %s384 = sphi 0, %s370
    %s388 = sphi 0, %s388
    %s390 = sphi 0, %s388
    %s391 = sphi 0, %s390
    %s405 = sphi 0, %s391
    %s409 = sphi 0, %s409
    %s411 = sphi 0, %s409
    %s412 = sphi 0, %s411
    %s426 = sphi 0, %s412
    %s430 = sphi 0, %s430
    %s432 = sphi 0, %s430
    %s433 = sphi 0, %s432
    %s447 = sphi 0, %s433
    %s453 = sphi 0, %s455
    %s456 = sphi 0, %s453
    %s457 = sphi 0, %s456
    %s473 = sphi 0, %s457
  $region4: #{tpu_custom_call.1} parent=0 // loop_header_branch
    %28 = sbr.rel (%p26) target = $region8
  $region5: #{tpu_custom_call.1} parent=0 // loop_body
    %s30 = ssub.s32 %s25, 1
    %s31 = ssub.s32 %s25, 2
    %s38 = sadd.s32 1, %s33
    %p39 = scmp.ge.s32.totalorder %s38, 1
    %s40 = scalar_select %p39, 0, %s38
    %s41 = sadd.s32 1, %s32
    %s42 = scalar_select %p39, %s41, %s32
    %p43 = scmp.ge.s32.totalorder %s42, 2
    %s44 = scalar_select %p43, 0, %s42
    %s45 = ssub.s32 %s32, %s44
    %s46 = ssub.s32 %s33, %s40
    %s47 = sor.u32 %s45, %s46
    %p48 = scmp.eq.s32.totalorder %s47, 0
    %s50 = sadd.s32 %s49, 1
    %s51 = scalar_select %p48, %s49, %s50
    %p54 = pneg %p48
    %p55 = scmp.eq.s32.totalorder %s25, 1
    %p56 = por %p54, %p55
    %p57 = scmp.ne.s32.totalorder %s49, %s52
    %p58 = scmp.eq.s32.totalorder %s25, 0
    %p59 = por %p57, %p58
    %p60 = scmp.ne.s32.totalorder %s49, %s52
    %p61 = scmp.eq.s32.totalorder %s30, 1
    %p62 = por %p60, %p61
    %p63 = scmp.ne.s32.totalorder %s52, %s53
    %p64 = scmp.eq.s32.totalorder %s30, 0
    %p65 = por %p63, %p64
    %p66 = scmp.ne.s32.totalorder %s52, %s53
    %p67 = scmp.eq.s32.totalorder %s31, 1
    %p68 = por %p66, %p67
    %p70 = scmp.ne.s32.totalorder %s53, %s69
    %p71 = scmp.eq.s32.totalorder %s31, 0
    %p72 = por %p70, %p71
    %s74 = sadd.s32 %s73, 1
    %p77 = scmp.eq.s32.totalorder %s25, 1
    %p78 = scmp.ne.s32.totalorder %s73, %s75
    %p79 = scmp.eq.s32.totalorder %s25, 0
    %p80 = por %p78, %p79
    %p81 = scmp.ne.s32.totalorder %s73, %s75
    %p82 = scmp.eq.s32.totalorder %s30, 1
    %p83 = por %p81, %p82
    %p84 = scmp.ne.s32.totalorder %s75, %s76
    %p85 = scmp.eq.s32.totalorder %s30, 0
    %p86 = por %p84, %p85
    %p87 = scmp.ne.s32.totalorder %s75, %s76
    %p88 = scmp.eq.s32.totalorder %s31, 1
    %p89 = por %p87, %p88
    %p91 = scmp.ne.s32.totalorder %s76, %s90
    %p92 = scmp.eq.s32.totalorder %s31, 0
    %p93 = por %p91, %p92
    %s95 = sadd.s32 %s94, 1
    %p98 = scmp.eq.s32.totalorder %s25, 1
    %p99 = scmp.ne.s32.totalorder %s94, %s96
    %p100 = scmp.eq.s32.totalorder %s25, 0
    %p101 = por %p99, %p100
    %p102 = scmp.ne.s32.totalorder %s94, %s96
    %p103 = scmp.eq.s32.totalorder %s30, 1
    %p104 = por %p102, %p103
    %p105 = scmp.ne.s32.totalorder %s96, %s97
    %p106 = scmp.eq.s32.totalorder %s30, 0
    %p107 = por %p105, %p106
    %p108 = scmp.ne.s32.totalorder %s96, %s97
    %p109 = scmp.eq.s32.totalorder %s31, 1
    %p110 = por %p108, %p109
    %p112 = scmp.ne.s32.totalorder %s97, %s111
    %p113 = scmp.eq.s32.totalorder %s31, 0
    %p114 = por %p112, %p113
    %s116 = sadd.s32 %s115, 1
    %p119 = scmp.eq.s32.totalorder %s25, 1
    %p120 = scmp.ne.s32.totalorder %s115, %s117
    %p121 = scmp.eq.s32.totalorder %s25, 0
    %p122 = por %p120, %p121
    %p123 = scmp.ne.s32.totalorder %s115, %s117
    %p124 = scmp.eq.s32.totalorder %s30, 1
    %p125 = por %p123, %p124
    %p126 = scmp.ne.s32.totalorder %s117, %s118
    %p127 = scmp.eq.s32.totalorder %s30, 0
    %p128 = por %p126, %p127
    %p129 = scmp.ne.s32.totalorder %s117, %s118
    %p130 = scmp.eq.s32.totalorder %s31, 1
    %p131 = por %p129, %p130
    %p133 = scmp.ne.s32.totalorder %s118, %s132
    %p134 = scmp.eq.s32.totalorder %s31, 0
    %p135 = por %p133, %p134
    %s137 = sadd.s32 %s136, 1
    %p140 = scmp.eq.s32.totalorder %s25, 1
    %p141 = scmp.ne.s32.totalorder %s136, %s138
    %p142 = scmp.eq.s32.totalorder %s25, 0
    %p143 = por %p141, %p142
    %p144 = scmp.ne.s32.totalorder %s136, %s138
    %p145 = scmp.eq.s32.totalorder %s30, 1
    %p146 = por %p144, %p145
    %p147 = scmp.ne.s32.totalorder %s138, %s139
    %p148 = scmp.eq.s32.totalorder %s30, 0
    %p149 = por %p147, %p148
    %p150 = scmp.ne.s32.totalorder %s138, %s139
    %p151 = scmp.eq.s32.totalorder %s31, 1
    %p152 = por %p150, %p151
    %p154 = scmp.ne.s32.totalorder %s139, %s153
    %p155 = scmp.eq.s32.totalorder %s31, 0
    %p156 = por %p154, %p155
    %s158 = sadd.s32 %s157, 1
    %p161 = scmp.eq.s32.totalorder %s25, 1
    %p162 = scmp.ne.s32.totalorder %s157, %s159
    %p163 = scmp.eq.s32.totalorder %s25, 0
    %p164 = por %p162, %p163
    %p165 = scmp.ne.s32.totalorder %s157, %s159
    %p166 = scmp.eq.s32.totalorder %s30, 1
    %p167 = por %p165, %p166
    %p168 = scmp.ne.s32.totalorder %s159, %s160
    %p169 = scmp.eq.s32.totalorder %s30, 0
    %p170 = por %p168, %p169
    %p171 = scmp.ne.s32.totalorder %s159, %s160
    %p172 = scmp.eq.s32.totalorder %s31, 1
    %p173 = por %p171, %p172
    %p175 = scmp.ne.s32.totalorder %s160, %s174
    %p176 = scmp.eq.s32.totalorder %s31, 0
    %p177 = por %p175, %p176
    %s179 = sadd.s32 %s178, 1
    %p182 = scmp.eq.s32.totalorder %s25, 1
    %p183 = scmp.ne.s32.totalorder %s178, %s180
    %p184 = scmp.eq.s32.totalorder %s25, 0
    %p185 = por %p183, %p184
    %p186 = scmp.ne.s32.totalorder %s178, %s180
    %p187 = scmp.eq.s32.totalorder %s30, 1
    %p188 = por %p186, %p187
    %p189 = scmp.ne.s32.totalorder %s180, %s181
    %p190 = scmp.eq.s32.totalorder %s30, 0
    %p191 = por %p189, %p190
    %p192 = scmp.ne.s32.totalorder %s180, %s181
    %p193 = scmp.eq.s32.totalorder %s31, 1
    %p194 = por %p192, %p193
    %p196 = scmp.ne.s32.totalorder %s181, %s195
    %p197 = scmp.eq.s32.totalorder %s31, 0
    %p198 = por %p196, %p197
    %s200 = sadd.s32 %s199, 1
    %p203 = scmp.eq.s32.totalorder %s25, 1
    %p204 = scmp.ne.s32.totalorder %s199, %s201
    %p205 = scmp.eq.s32.totalorder %s25, 0
    %p206 = por %p204, %p205
    %p207 = scmp.ne.s32.totalorder %s199, %s201
    %p208 = scmp.eq.s32.totalorder %s30, 1
    %p209 = por %p207, %p208
    %p210 = scmp.ne.s32.totalorder %s201, %s202
    %p211 = scmp.eq.s32.totalorder %s30, 0
    %p212 = por %p210, %p211
    %p213 = scmp.ne.s32.totalorder %s201, %s202
    %p214 = scmp.eq.s32.totalorder %s31, 1
    %p215 = por %p213, %p214
    %p217 = scmp.ne.s32.totalorder %s202, %s216
    %p218 = scmp.eq.s32.totalorder %s31, 0
    %p219 = por %p217, %p218
    %s221 = sadd.s32 %s220, 1
    %p224 = scmp.eq.s32.totalorder %s25, 1
    %p225 = scmp.ne.s32.totalorder %s220, %s222
    %p226 = scmp.eq.s32.totalorder %s25, 0
    %p227 = por %p225, %p226
    %p228 = scmp.ne.s32.totalorder %s220, %s222
    %p229 = scmp.eq.s32.totalorder %s30, 1
    %p230 = por %p228, %p229
    %p231 = scmp.ne.s32.totalorder %s222, %s223
    %p232 = scmp.eq.s32.totalorder %s30, 0
    %p233 = por %p231, %p232
    %p234 = scmp.ne.s32.totalorder %s222, %s223
    %p235 = scmp.eq.s32.totalorder %s31, 1
    %p236 = por %p234, %p235
    %p238 = scmp.ne.s32.totalorder %s223, %s237
    %p239 = scmp.eq.s32.totalorder %s31, 0
    %p240 = por %p238, %p239
    %s242 = sadd.s32 %s241, 1
    %p245 = scmp.eq.s32.totalorder %s25, 1
    %p246 = scmp.ne.s32.totalorder %s241, %s243
    %p247 = scmp.eq.s32.totalorder %s25, 0
    %p248 = por %p246, %p247
    %p249 = scmp.ne.s32.totalorder %s241, %s243
    %p250 = scmp.eq.s32.totalorder %s30, 1
    %p251 = por %p249, %p250
    %p252 = scmp.ne.s32.totalorder %s243, %s244
    %p253 = scmp.eq.s32.totalorder %s30, 0
    %p254 = por %p252, %p253
    %p255 = scmp.ne.s32.totalorder %s243, %s244
    %p256 = scmp.eq.s32.totalorder %s31, 1
    %p257 = por %p255, %p256
    %p259 = scmp.ne.s32.totalorder %s244, %s258
    %p260 = scmp.eq.s32.totalorder %s31, 0
    %p261 = por %p259, %p260
    %s263 = sadd.s32 %s262, 1
    %p266 = scmp.eq.s32.totalorder %s25, 1
    %p267 = scmp.ne.s32.totalorder %s262, %s264
    %p268 = scmp.eq.s32.totalorder %s25, 0
    %p269 = por %p267, %p268
    %p270 = scmp.ne.s32.totalorder %s262, %s264
    %p271 = scmp.eq.s32.totalorder %s30, 1
    %p272 = por %p270, %p271
    %p273 = scmp.ne.s32.totalorder %s264, %s265
    %p274 = scmp.eq.s32.totalorder %s30, 0
    %p275 = por %p273, %p274
    %p276 = scmp.ne.s32.totalorder %s264, %s265
    %p277 = scmp.eq.s32.totalorder %s31, 1
    %p278 = por %p276, %p277
    %p280 = scmp.ne.s32.totalorder %s265, %s279
    %p281 = scmp.eq.s32.totalorder %s31, 0
    %p282 = por %p280, %p281
    %s284 = sadd.s32 %s283, 1
    %p287 = scmp.eq.s32.totalorder %s25, 1
    %p288 = scmp.ne.s32.totalorder %s283, %s285
    %p289 = scmp.eq.s32.totalorder %s25, 0
    %p290 = por %p288, %p289
    %p291 = scmp.ne.s32.totalorder %s283, %s285
    %p292 = scmp.eq.s32.totalorder %s30, 1
    %p293 = por %p291, %p292
    %p294 = scmp.ne.s32.totalorder %s285, %s286
    %p295 = scmp.eq.s32.totalorder %s30, 0
    %p296 = por %p294, %p295
    %p297 = scmp.ne.s32.totalorder %s285, %s286
    %p298 = scmp.eq.s32.totalorder %s31, 1
    %p299 = por %p297, %p298
    %p301 = scmp.ne.s32.totalorder %s286, %s300
    %p302 = scmp.eq.s32.totalorder %s31, 0
    %p303 = por %p301, %p302
    %s305 = sadd.s32 %s304, 1
    %p308 = scmp.eq.s32.totalorder %s25, 1
    %p309 = scmp.ne.s32.totalorder %s304, %s306
    %p310 = scmp.eq.s32.totalorder %s25, 0
    %p311 = por %p309, %p310
    %p312 = scmp.ne.s32.totalorder %s304, %s306
    %p313 = scmp.eq.s32.totalorder %s30, 1
    %p314 = por %p312, %p313
    %p315 = scmp.ne.s32.totalorder %s306, %s307
    %p316 = scmp.eq.s32.totalorder %s30, 0
    %p317 = por %p315, %p316
    %p318 = scmp.ne.s32.totalorder %s306, %s307
    %p319 = scmp.eq.s32.totalorder %s31, 1
    %p320 = por %p318, %p319
    %p322 = scmp.ne.s32.totalorder %s307, %s321
    %p323 = scmp.eq.s32.totalorder %s31, 0
    %p324 = por %p322, %p323
    %s326 = sadd.s32 %s325, 1
    %p329 = scmp.eq.s32.totalorder %s25, 1
    %p330 = scmp.ne.s32.totalorder %s325, %s327
    %p331 = scmp.eq.s32.totalorder %s25, 0
    %p332 = por %p330, %p331
    %p333 = scmp.ne.s32.totalorder %s325, %s327
    %p334 = scmp.eq.s32.totalorder %s30, 1
    %p335 = por %p333, %p334
    %p336 = scmp.ne.s32.totalorder %s327, %s328
    %p337 = scmp.eq.s32.totalorder %s30, 0
    %p338 = por %p336, %p337
    %p339 = scmp.ne.s32.totalorder %s327, %s328
    %p340 = scmp.eq.s32.totalorder %s31, 1
    %p341 = por %p339, %p340
    %p343 = scmp.ne.s32.totalorder %s328, %s342
    %p344 = scmp.eq.s32.totalorder %s31, 0
    %p345 = por %p343, %p344
    %s347 = sadd.s32 %s346, 1
    %p350 = scmp.eq.s32.totalorder %s25, 1
    %p351 = scmp.ne.s32.totalorder %s346, %s348
    %p352 = scmp.eq.s32.totalorder %s25, 0
    %p353 = por %p351, %p352
    %p354 = scmp.ne.s32.totalorder %s346, %s348
    %p355 = scmp.eq.s32.totalorder %s30, 1
    %p356 = por %p354, %p355
    %p357 = scmp.ne.s32.totalorder %s348, %s349
    %p358 = scmp.eq.s32.totalorder %s30, 0
    %p359 = por %p357, %p358
    %p360 = scmp.ne.s32.totalorder %s348, %s349
    %p361 = scmp.eq.s32.totalorder %s31, 1
    %p362 = por %p360, %p361
    %p364 = scmp.ne.s32.totalorder %s349, %s363
    %p365 = scmp.eq.s32.totalorder %s31, 0
    %p366 = por %p364, %p365
    %s368 = sadd.s32 %s367, 1
    %p371 = scmp.eq.s32.totalorder %s25, 1
    %p372 = scmp.ne.s32.totalorder %s367, %s369
    %p373 = scmp.eq.s32.totalorder %s25, 0
    %p374 = por %p372, %p373
    %p375 = scmp.ne.s32.totalorder %s367, %s369
    %p376 = scmp.eq.s32.totalorder %s30, 1
    %p377 = por %p375, %p376
    %p378 = scmp.ne.s32.totalorder %s369, %s370
    %p379 = scmp.eq.s32.totalorder %s30, 0
    %p380 = por %p378, %p379
    %p381 = scmp.ne.s32.totalorder %s369, %s370
    %p382 = scmp.eq.s32.totalorder %s31, 1
    %p383 = por %p381, %p382
    %p385 = scmp.ne.s32.totalorder %s370, %s384
    %p386 = scmp.eq.s32.totalorder %s31, 0
    %p387 = por %p385, %p386
    %s389 = sadd.s32 %s388, 1
    %p392 = scmp.eq.s32.totalorder %s25, 1
    %p393 = scmp.ne.s32.totalorder %s388, %s390
    %p394 = scmp.eq.s32.totalorder %s25, 0
    %p395 = por %p393, %p394
    %p396 = scmp.ne.s32.totalorder %s388, %s390
    %p397 = scmp.eq.s32.totalorder %s30, 1
    %p398 = por %p396, %p397
    %p399 = scmp.ne.s32.totalorder %s390, %s391
    %p400 = scmp.eq.s32.totalorder %s30, 0
    %p401 = por %p399, %p400
    %p402 = scmp.ne.s32.totalorder %s390, %s391
    %p403 = scmp.eq.s32.totalorder %s31, 1
    %p404 = por %p402, %p403
    %p406 = scmp.ne.s32.totalorder %s391, %s405
    %p407 = scmp.eq.s32.totalorder %s31, 0
    %p408 = por %p406, %p407
    %s410 = sadd.s32 %s409, 1
    %p413 = scmp.eq.s32.totalorder %s25, 1
    %p414 = scmp.ne.s32.totalorder %s409, %s411
    %p415 = scmp.eq.s32.totalorder %s25, 0
    %p416 = por %p414, %p415
    %p417 = scmp.ne.s32.totalorder %s409, %s411
    %p418 = scmp.eq.s32.totalorder %s30, 1
    %p419 = por %p417, %p418
    %p420 = scmp.ne.s32.totalorder %s411, %s412
    %p421 = scmp.eq.s32.totalorder %s30, 0
    %p422 = por %p420, %p421
    %p423 = scmp.ne.s32.totalorder %s411, %s412
    %p424 = scmp.eq.s32.totalorder %s31, 1
    %p425 = por %p423, %p424
    %p427 = scmp.ne.s32.totalorder %s412, %s426
    %p428 = scmp.eq.s32.totalorder %s31, 0
    %p429 = por %p427, %p428
    %s431 = sadd.s32 %s430, 1
    %p434 = scmp.eq.s32.totalorder %s25, 1
    %p435 = scmp.ne.s32.totalorder %s430, %s432
    %p436 = scmp.eq.s32.totalorder %s25, 0
    %p437 = por %p435, %p436
    %p438 = scmp.ne.s32.totalorder %s430, %s432
    %p439 = scmp.eq.s32.totalorder %s30, 1
    %p440 = por %p438, %p439
    %p441 = scmp.ne.s32.totalorder %s432, %s433
    %p442 = scmp.eq.s32.totalorder %s30, 0
    %p443 = por %p441, %p442
    %p444 = scmp.ne.s32.totalorder %s432, %s433
    %p445 = scmp.eq.s32.totalorder %s31, 1
    %p446 = por %p444, %p445
    %p448 = scmp.ne.s32.totalorder %s433, %s447
    %p449 = scmp.eq.s32.totalorder %s31, 0
    %p450 = por %p448, %p449
    %s451 = ssub.s32 %s32, %s44
    %p452 = scmp.eq.s32.totalorder %s451, 0
    %s454 = sadd.s32 %s453, 1
    %s455 = scalar_select %p452, %s453, %s454
    %p458 = pneg %p452
    %p459 = scmp.eq.s32.totalorder %s25, 1
    %p460 = por %p458, %p459
    %p461 = scmp.ne.s32.totalorder %s453, %s456
    %p462 = scmp.eq.s32.totalorder %s25, 0
    %p463 = por %p461, %p462
    %p464 = scmp.ne.s32.totalorder %s453, %s456
    %p465 = scmp.eq.s32.totalorder %s30, 1
    %p466 = por %p464, %p465
    %p467 = scmp.ne.s32.totalorder %s456, %s457
    %p468 = scmp.eq.s32.totalorder %s30, 0
    %p469 = por %p467, %p468
    %p470 = scmp.ne.s32.totalorder %s456, %s457
    %p471 = scmp.eq.s32.totalorder %s31, 1
    %p472 = por %p470, %p471
    %p474 = scmp.ne.s32.totalorder %s457, %s473
    %p475 = scmp.eq.s32.totalorder %s31, 0
    %p476 = por %p474, %p475
    %p477 = scmp.le.s32.totalorder 1, %s25
    %p478 = scmp.lt.s32.totalorder %s25, 3
    %p479 = pnand %p477, %p478
    %p480 = pneg %p479
    // Predicated region
    $region9: #{tpu_custom_call.1} parent=5 // pred_check
      _
    $region10: #{tpu_custom_call.1} parent=5 // pred_check_branch
      %482 = sbr.rel (%p479) target = $region12
    $region11: #{tpu_custom_call.1} parent=5 // pred_region
      %s483 = ssub.s32 %s25, 1
      // Predicated region
      $region13: #{tpu_custom_call.1} parent=11 // pred_check
        %p484 = pneg %p86
      $region14: #{tpu_custom_call.1} parent=11 // pred_check_branch
        %486 = sbr.rel (%p484) target = $region16
      $region15: #{tpu_custom_call.1} parent=11 // pred_region
        _
      $region16: #{tpu_custom_call.1} parent=11 // pred_fallthru
        _
      // Predicated region
      $region17: #{tpu_custom_call.1} parent=11 // pred_check
        %p487 = pneg %p107
      $region18: #{tpu_custom_call.1} parent=11 // pred_check_branch
        %489 = sbr.rel (%p487) target = $region20
      $region19: #{tpu_custom_call.1} parent=11 // pred_region
        _
      $region20: #{tpu_custom_call.1} parent=11 // pred_fallthru
        _
      // Predicated region
      $region21: #{tpu_custom_call.1} parent=11 // pred_check
        %p490 = pneg %p128
      $region22: #{tpu_custom_call.1} parent=11 // pred_check_branch
        %492 = sbr.rel (%p490) target = $region24
      $region23: #{tpu_custom_call.1} parent=11 // pred_region
        _
      $region24: #{tpu_custom_call.1} parent=11 // pred_fallthru
        _
      // Predicated region
      $region25: #{tpu_custom_call.1} parent=11 // pred_check
        %p493 = pneg %p149
      $region26: #{tpu_custom_call.1} parent=11 // pred_check_branch
        %495 = sbr.rel (%p493) target = $region28
      $region27: #{tpu_custom_call.1} parent=11 // pred_region
        _
      $region28: #{tpu_custom_call.1} parent=11 // pred_fallthru
        _
      // Predicated region
      $region29: #{tpu_custom_call.1} parent=11 // pred_check
        %p496 = pneg %p170
      $region30: #{tpu_custom_call.1} parent=11 // pred_check_branch
        %498 = sbr.rel (%p496) target = $region32
      $region31: #{tpu_custom_call.1} parent=11 // pred_region
        _
      $region32: #{tpu_custom_call.1} parent=11 // pred_fallthru
        _
      // Predicated region
      $region33: #{tpu_custom_call.1} parent=11 // pred_check
        %p499 = pneg %p191
      $region34: #{tpu_custom_call.1} parent=11 // pred_check_branch
        %501 = sbr.rel (%p499) target = $region36
      $region35: #{tpu_custom_call.1} parent=11 // pred_region
        _
      $region36: #{tpu_custom_call.1} parent=11 // pred_fallthru
        _
      // Predicated region
      $region37: #{tpu_custom_call.1} parent=11 // pred_check
        %p502 = pneg %p212
      $region38: #{tpu_custom_call.1} parent=11 // pred_check_branch
        %504 = sbr.rel (%p502) target = $region40
      $region39: #{tpu_custom_call.1} parent=11 // pred_region
        _
      $region40: #{tpu_custom_call.1} parent=11 // pred_fallthru
        _
      // Predicated region
      $region41: #{tpu_custom_call.1} parent=11 // pred_check
        %p505 = pneg %p233
      $region42: #{tpu_custom_call.1} parent=11 // pred_check_branch
        %507 = sbr.rel (%p505) target = $region44
      $region43: #{tpu_custom_call.1} parent=11 // pred_region
        _
      $region44: #{tpu_custom_call.1} parent=11 // pred_fallthru
        _
      // Predicated region
      $region45: #{tpu_custom_call.1} parent=11 // pred_check
        %p508 = pneg %p254
      $region46: #{tpu_custom_call.1} parent=11 // pred_check_branch
        %510 = sbr.rel (%p508) target = $region48
      $region47: #{tpu_custom_call.1} parent=11 // pred_region
        _
      $region48: #{tpu_custom_call.1} parent=11 // pred_fallthru
        _
      // Predicated region
      $region49: #{tpu_custom_call.1} parent=11 // pred_check
        %p511 = pneg %p275
      $region50: #{tpu_custom_call.1} parent=11 // pred_check_branch
        %513 = sbr.rel (%p511) target = $region52
      $region51: #{tpu_custom_call.1} parent=11 // pred_region
        _
      $region52: #{tpu_custom_call.1} parent=11 // pred_fallthru
        _
      // Predicated region
      $region53: #{tpu_custom_call.1} parent=11 // pred_check
        %p514 = pneg %p296
      $region54: #{tpu_custom_call.1} parent=11 // pred_check_branch
        %516 = sbr.rel (%p514) target = $region56
      $region55: #{tpu_custom_call.1} parent=11 // pred_region
        _
      $region56: #{tpu_custom_call.1} parent=11 // pred_fallthru
        _
      // Predicated region
      $region57: #{tpu_custom_call.1} parent=11 // pred_check
        %p517 = pneg %p317
      $region58: #{tpu_custom_call.1} parent=11 // pred_check_branch
        %519 = sbr.rel (%p517) target = $region60
      $region59: #{tpu_custom_call.1} parent=11 // pred_region
        _
      $region60: #{tpu_custom_call.1} parent=11 // pred_fallthru
        _
      // Predicated region
      $region61: #{tpu_custom_call.1} parent=11 // pred_check
        %p520 = pneg %p338
      $region62: #{tpu_custom_call.1} parent=11 // pred_check_branch
        %522 = sbr.rel (%p520) target = $region64
      $region63: #{tpu_custom_call.1} parent=11 // pred_region
        _
      $region64: #{tpu_custom_call.1} parent=11 // pred_fallthru
        _
      // Predicated region
      $region65: #{tpu_custom_call.1} parent=11 // pred_check
        %p523 = pneg %p359
      $region66: #{tpu_custom_call.1} parent=11 // pred_check_branch
        %525 = sbr.rel (%p523) target = $region68
      $region67: #{tpu_custom_call.1} parent=11 // pred_region
        _
      $region68: #{tpu_custom_call.1} parent=11 // pred_fallthru
        _
      // Predicated region
      $region69: #{tpu_custom_call.1} parent=11 // pred_check
        %p526 = pneg %p380
      $region70: #{tpu_custom_call.1} parent=11 // pred_check_branch
        %528 = sbr.rel (%p526) target = $region72
      $region71: #{tpu_custom_call.1} parent=11 // pred_region
        _
      $region72: #{tpu_custom_call.1} parent=11 // pred_fallthru
        _
      // Predicated region
      $region73: #{tpu_custom_call.1} parent=11 // pred_check
        %p529 = pneg %p401
      $region74: #{tpu_custom_call.1} parent=11 // pred_check_branch
        %531 = sbr.rel (%p529) target = $region76
      $region75: #{tpu_custom_call.1} parent=11 // pred_region
        _
      $region76: #{tpu_custom_call.1} parent=11 // pred_fallthru
        _
      // Predicated region
      $region77: #{tpu_custom_call.1} parent=11 // pred_check
        %p532 = pneg %p422
      $region78: #{tpu_custom_call.1} parent=11 // pred_check_branch
        %534 = sbr.rel (%p532) target = $region80
      $region79: #{tpu_custom_call.1} parent=11 // pred_region
        _
      $region80: #{tpu_custom_call.1} parent=11 // pred_fallthru
        _
      // Predicated region
      $region81: #{tpu_custom_call.1} parent=11 // pred_check
        %p535 = pneg %p443
      $region82: #{tpu_custom_call.1} parent=11 // pred_check_branch
        %537 = sbr.rel (%p535) target = $region84
      $region83: #{tpu_custom_call.1} parent=11 // pred_region
        _
      $region84: #{tpu_custom_call.1} parent=11 // pred_fallthru
        _
    $region12: #{tpu_custom_call.1} parent=5 // pred_fallthru
      _
    %p538 = scmp.lt.s32.totalorder %s25, 2
    // Predicated region
    $region85: #{tpu_custom_call.1} parent=5 // pred_check
      %p539 = pneg %p538
    $region86: #{tpu_custom_call.1} parent=5 // pred_check_branch
      %541 = sbr.rel (%p539) target = $region88
    $region87: #{tpu_custom_call.1} parent=5 // pred_region
      // Predicated region
      $region89: #{tpu_custom_call.1} parent=87 // pred_check
        %p542 = pneg %p59
      $region90: #{tpu_custom_call.1} parent=87 // pred_check_branch
        %544 = sbr.rel (%p542) target = $region92
      $region91: #{tpu_custom_call.1} parent=87 // pred_region
        %p545 = scmp.lt.s32.totalorder %s32, 1
        %s546 = scalar_select %p545, %s32, 1
        %p547 = scmp.lt.s32.totalorder %s33, 0
        %s548 = scalar_select %p547, %s33, 0
        %s549 = smul.addr %s546, 8
        %s550 = sadd.s32 %s548, %s549
        %s551 = smul.addr %s550, 8
        %s552 = scalar_lea.vmem %s0, %s551
      $region92: #{tpu_custom_call.1} parent=87 // pred_fallthru
        _
    $region88: #{tpu_custom_call.1} parent=5 // pred_fallthru
      _
    %p553 = scmp.le.s32.totalorder 1, %s25
    %p554 = scmp.lt.s32.totalorder %s25, 3
    %p555 = pnand %p553, %p554
    %p556 = pneg %p555
    // Predicated region
    $region93: #{tpu_custom_call.1} parent=5 // pred_check
      _
    $region94: #{tpu_custom_call.1} parent=5 // pred_check_branch
      %558 = sbr.rel (%p555) target = $region96
    $region95: #{tpu_custom_call.1} parent=5 // pred_region
      %s559 = ssub.s32 %s25, 1
      %p560 = scmp.lt.s32.totalorder %s34, 1
      %s561 = scalar_select %p560, %s34, 1
      %p562 = scmp.lt.s32.totalorder %s35, 0
      %s563 = scalar_select %p562, %s35, 0
      %s564 = smul.addr %s561, 8
      %s565 = sadd.s32 %s563, %s564
      %s566 = smul.addr %s565, 8
      %s567 = scalar_lea.vmem %s0, %s566
      %p568 = pneg %p65
      %p569 = pneg %p62
      %p570 = pneg %p86
      %p571 = pneg %p83
      %p572 = pneg %p107
      %p573 = pneg %p104
      %p574 = pneg %p128
      %p575 = pneg %p125
      %p576 = pneg %p149
      %p577 = pneg %p146
      %p578 = pneg %p170
      %p579 = pneg %p167
      %p580 = pneg %p191
      %p581 = pneg %p188
      %p582 = pneg %p212
      %p583 = pneg %p209
      %p584 = pneg %p233
      %p585 = pneg %p230
      %p586 = pneg %p254
      %p587 = pneg %p251
      %p588 = pneg %p275
      %p589 = pneg %p272
      %p590 = pneg %p296
      %p591 = pneg %p293
      %p592 = pneg %p317
      %p593 = pneg %p314
      %p594 = pneg %p338
      %p595 = pneg %p335
      %p596 = pneg %p359
      %p597 = pneg %p356
      %p598 = pneg %p380
      %p599 = pneg %p377
      %p600 = pneg %p401
      %p601 = pneg %p398
      %p602 = pneg %p422
      %p603 = pneg %p419
      %p604 = pneg %p443
      %p605 = pneg %p440
      %p606 = pneg %p469
      %p607 = pneg %p466
      %p608 = scmp.lt.s32.totalorder %s34, 1
      %s609 = scalar_select %p608, %s34, 1
      %s610 = smul.addr %s609, 2
      %s611 = smul.addr %s610, 8
      %s612 = scalar_lea.vmem %s19, %s611
      %p613 = scmp.lt.s32.totalorder %s34, 1
      %s614 = scalar_select %p613, %s34, 1
      %p615 = scmp.lt.s32.totalorder %s35, 0
      %s616 = scalar_select %p615, %s35, 0
      %s617 = smul.addr %s614, 8
      %s618 = sadd.s32 %s616, %s617
      %s619 = smul.addr %s618, 8
      %s620 = scalar_lea.vmem %s0, %s619
      %p621 = scmp.lt.s32.totalorder %s34, 1
      %s622 = scalar_select %p621, %s34, 1
      %s623 = smul.addr %s622, 2
      %s624 = smul.addr %s623, 8
      %s625 = scalar_lea.vmem %s19, %s624
      %v626 = vld [vmem:[%s620] sm:$0xff]
      %v627 = vld [vmem:[%s620 + $0x8] sm:$0xff]
      %v628 = vld [vmem:[%s620 + $0x10] sm:$0xff]
      %v629 = vld [vmem:[%s620 + $0x18] sm:$0xff]
      %v630 = vld [vmem:[%s620 + $0x20] sm:$0xff]
      %v631 = vld [vmem:[%s620 + $0x28] sm:$0xff]
      %v632 = vld [vmem:[%s620 + $0x30] sm:$0xff]
      %v633 = vld [vmem:[%s620 + $0x38] sm:$0xff]
      %v634 = vld [vmem:[%s1] sm:$0xff]
      %v635 = vld [vmem:[%s1 + $0x8] sm:$0xff]
      %v636 = vld [vmem:[%s1 + $0x10] sm:$0xff]
      %v637 = vld [vmem:[%s1 + $0x18] sm:$0xff]
      %v638 = vld [vmem:[%s1 + $0x20] sm:$0xff]
      %v639 = vld [vmem:[%s1 + $0x28] sm:$0xff]
      %v640 = vld [vmem:[%s1 + $0x30] sm:$0xff]
      %v641 = vld [vmem:[%s1 + $0x38] sm:$0xff]
      %v642 = vld [vmem:[%s1 + $0x40] sm:$0xff]
      %v643 = vld [vmem:[%s1 + $0x48] sm:$0xff]
      %v644 = vld [vmem:[%s1 + $0x50] sm:$0xff]
      %v645 = vld [vmem:[%s1 + $0x58] sm:$0xff]
      %v646 = vld [vmem:[%s1 + $0x60] sm:$0xff]
      %v647 = vld [vmem:[%s1 + $0x68] sm:$0xff]
      %v648 = vld [vmem:[%s1 + $0x70] sm:$0xff]
      %v649 = vld [vmem:[%s1 + $0x78] sm:$0xff]
      %v650 = vld [vmem:[%s2] sm:$0xff]
      %v651 = vld [vmem:[%s2 + $0x8] sm:$0xff]
      %v652 = vld [vmem:[%s2 + $0x10] sm:$0xff]
      %v653 = vld [vmem:[%s2 + $0x18] sm:$0xff]
      %v654 = vld [vmem:[%s2 + $0x20] sm:$0xff]
      %v655 = vld [vmem:[%s2 + $0x28] sm:$0xff]
      %v656 = vld [vmem:[%s2 + $0x30] sm:$0xff]
      %v657 = vld [vmem:[%s2 + $0x38] sm:$0xff]
      %v658 = vld [vmem:[%s2 + $0x40] sm:$0xff]
      %v659 = vld [vmem:[%s2 + $0x48] sm:$0xff]
      %v660 = vld [vmem:[%s2 + $0x50] sm:$0xff]
      %v661 = vld [vmem:[%s2 + $0x58] sm:$0xff]
      %v662 = vld [vmem:[%s2 + $0x60] sm:$0xff]
      %v663 = vld [vmem:[%s2 + $0x68] sm:$0xff]
      %v664 = vld [vmem:[%s2 + $0x70] sm:$0xff]
      %v665 = vld [vmem:[%s2 + $0x78] sm:$0xff]
      %667 = vset.pattern.permute.xlu0 0
      %668 = vperm.xlu0 %667, %v650
      %v669 = vpop.permute.xlu0 %668
      %672 = vset.pattern.permute.xlu0 0
      %673 = vperm.xlu0 %672, %v651
      %v674 = vpop.permute.xlu0 %673
      %677 = vset.pattern.permute.xlu0 0
      %678 = vperm.xlu0 %677, %v652
      %v679 = vpop.permute.xlu0 %678
      %682 = vset.pattern.permute.xlu0 0
      %683 = vperm.xlu0 %682, %v653
      %v684 = vpop.permute.xlu0 %683
      %687 = vset.pattern.permute.xlu0 0
      %688 = vperm.xlu0 %687, %v654
      %v689 = vpop.permute.xlu0 %688
      %692 = vset.pattern.permute.xlu0 0
      %693 = vperm.xlu0 %692, %v655
      %v694 = vpop.permute.xlu0 %693
      %697 = vset.pattern.permute.xlu0 0
      %698 = vperm.xlu0 %697, %v656
      %v699 = vpop.permute.xlu0 %698
      %702 = vset.pattern.permute.xlu0 0
      %703 = vperm.xlu0 %702, %v657
      %v704 = vpop.permute.xlu0 %703
      %707 = vset.pattern.permute.xlu0 0
      %708 = vperm.xlu0 %707, %v658
      %v709 = vpop.permute.xlu0 %708
      %712 = vset.pattern.permute.xlu0 0
      %713 = vperm.xlu0 %712, %v659
      %v714 = vpop.permute.xlu0 %713
      %717 = vset.pattern.permute.xlu0 0
      %718 = vperm.xlu0 %717, %v660
      %v719 = vpop.permute.xlu0 %718
      %722 = vset.pattern.permute.xlu0 0
      %723 = vperm.xlu0 %722, %v661
      %v724 = vpop.permute.xlu0 %723
      %727 = vset.pattern.permute.xlu0 0
      %728 = vperm.xlu0 %727, %v662
      %v729 = vpop.permute.xlu0 %728
      %732 = vset.pattern.permute.xlu0 0
      %733 = vperm.xlu0 %732, %v663
      %v734 = vpop.permute.xlu0 %733
      %737 = vset.pattern.permute.xlu0 0
      %738 = vperm.xlu0 %737, %v664
      %v739 = vpop.permute.xlu0 %738
      %742 = vset.pattern.permute.xlu0 0
      %743 = vperm.xlu0 %742, %v665
      %v744 = vpop.permute.xlu0 %743
      %vm746 = vcmask 523264
      %v748 = vsel %vm746, %v634, 0
      %v751 = vsel %vm746, %v635, 0
      %v754 = vsel %vm746, %v636, 0
      %v757 = vsel %vm746, %v637, 0
      %v760 = vsel %vm746, %v638, 0
      %v763 = vsel %vm746, %v639, 0
      %v766 = vsel %vm746, %v640, 0
      %v769 = vsel %vm746, %v641, 0
      %v772 = vsel %vm746, %v642, 0
      %v775 = vsel %vm746, %v643, 0
      %v778 = vsel %vm746, %v644, 0
      %v781 = vsel %vm746, %v645, 0
      %v784 = vsel %vm746, %v646, 0
      %v787 = vsel %vm746, %v647, 0
      %v790 = vsel %vm746, %v648, 0
      %v793 = vsel %vm746, %v649, 0
      %795 = vmatpush.msra.mxu0 0.0
      %796 = vmatpush.msra.mxu0 0.0
      %797 = vmatpush.msra.mxu0 0.0
      %798 = vmatpush.msra.mxu0 0.0
      %799 = vmatpush.msra.mxu0 0.0
      %800 = vmatpush.msra.mxu0 0.0
      %801 = vmatpush.msra.mxu0 0.0
      %802 = vmatpush.msra.mxu0 0.0
      %803 = vmatpush.msra.mxu0 %v633
      %804 = vmatpush.msra.mxu0 %v632
      %805 = vmatpush.msra.mxu0 %v631
      %806 = vmatpush.msra.mxu0 %v630
      %807 = vmatpush.msra.mxu0 %v629
      %808 = vmatpush.msra.mxu0 %v628
      %809 = vmatpush.msra.mxu0 %v627
      %810 = vmatpush.msra.mxu0 %v626
      %811 = vmatmul.f32.gmra.mxu0 %v748
      %v812 = vpop.f32.mrf.mxu0
      %v813 = vadd.f32 %v669, %v812
      %814 = vmatmul.f32.gmra.mxu0 %v751
      %v815 = vpop.f32.mrf.mxu0
      %v816 = vadd.f32 %v674, %v815
      %817 = vmatmul.f32.gmra.mxu0 %v754
      %v818 = vpop.f32.mrf.mxu0
      %v819 = vadd.f32 %v679, %v818
      %820 = vmatmul.f32.gmra.mxu0 %v757
      %v821 = vpop.f32.mrf.mxu0
      %v822 = vadd.f32 %v684, %v821
      %823 = vmatmul.f32.gmra.mxu0 %v760
      %v824 = vpop.f32.mrf.mxu0
      %v825 = vadd.f32 %v689, %v824
      %826 = vmatmul.f32.gmra.mxu0 %v763
      %v827 = vpop.f32.mrf.mxu0
      %v828 = vadd.f32 %v694, %v827
      %829 = vmatmul.f32.gmra.mxu0 %v766
      %v830 = vpop.f32.mrf.mxu0
      %v831 = vadd.f32 %v699, %v830
      %832 = vmatmul.f32.gmra.mxu0 %v769
      %v833 = vpop.f32.mrf.mxu0
      %v834 = vadd.f32 %v704, %v833
      %835 = vmatmul.f32.gmra.mxu0 %v772
      %v836 = vpop.f32.mrf.mxu0
      %v837 = vadd.f32 %v709, %v836
      %838 = vmatmul.f32.gmra.mxu0 %v775
      %v839 = vpop.f32.mrf.mxu0
      %v840 = vadd.f32 %v714, %v839
      %841 = vmatmul.f32.gmra.mxu0 %v778
      %v842 = vpop.f32.mrf.mxu0
      %v843 = vadd.f32 %v719, %v842
      %844 = vmatmul.f32.gmra.mxu0 %v781
      %v845 = vpop.f32.mrf.mxu0
      %v846 = vadd.f32 %v724, %v845
      %847 = vmatmul.f32.gmra.mxu0 %v784
      %v848 = vpop.f32.mrf.mxu0
      %v849 = vadd.f32 %v729, %v848
      %850 = vmatmul.f32.gmra.mxu0 %v787
      %v851 = vpop.f32.mrf.mxu0
      %v852 = vadd.f32 %v734, %v851
      %853 = vmatmul.f32.gmra.mxu0 %v790
      %v854 = vpop.f32.mrf.mxu0
      %v855 = vadd.f32 %v739, %v854
      %856 = vmatmul.f32.gmra.mxu0 %v793
      %v857 = vpop.f32.mrf.mxu0
      %v858 = vadd.f32 %v744, %v857
      %859 = vdwg.mxu0
      %v860 = vmax.f32 %v813, 0.0
      %v861 = vmax.f32 %v816, 0.0
      %v862 = vmax.f32 %v819, 0.0
      %v863 = vmax.f32 %v822, 0.0
      %v864 = vmax.f32 %v825, 0.0
      %v865 = vmax.f32 %v828, 0.0
      %v866 = vmax.f32 %v831, 0.0
      %v867 = vmax.f32 %v834, 0.0
      %v868 = vmax.f32 %v837, 0.0
      %v869 = vmax.f32 %v840, 0.0
      %v870 = vmax.f32 %v843, 0.0
      %v871 = vmax.f32 %v846, 0.0
      %v872 = vmax.f32 %v849, 0.0
      %v873 = vmax.f32 %v852, 0.0
      %v874 = vmax.f32 %v855, 0.0
      %v875 = vmax.f32 %v858, 0.0
      %v876 = vmax.f32 %v860, %v868
      %v877 = vmax.f32 %v861, %v869
      %v878 = vmax.f32 %v862, %v870
      %v879 = vmax.f32 %v863, %v871
      %v880 = vmax.f32 %v864, %v872
      %v881 = vmax.f32 %v865, %v873
      %v882 = vmax.f32 %v866, %v874
      %v883 = vmax.f32 %v867, %v875
      %v884 = vld [vmem:[%s3] sm:$0xff]
      %v885 = vld [vmem:[%s3 + $0x8] sm:$0xff]
      %v886 = vld [vmem:[%s3 + $0x10] sm:$0xff]
      %v887 = vld [vmem:[%s3 + $0x18] sm:$0xff]
      %v888 = vld [vmem:[%s3 + $0x20] sm:$0xff]
      %v889 = vld [vmem:[%s3 + $0x28] sm:$0xff]
      %v890 = vld [vmem:[%s3 + $0x30] sm:$0xff]
      %v891 = vld [vmem:[%s3 + $0x38] sm:$0xff]
      %v892 = vld [vmem:[%s3 + $0x40] sm:$0xff]
      %v893 = vld [vmem:[%s3 + $0x48] sm:$0xff]
      %v894 = vld [vmem:[%s3 + $0x50] sm:$0xff]
      %v895 = vld [vmem:[%s3 + $0x58] sm:$0xff]
      %v896 = vld [vmem:[%s3 + $0x60] sm:$0xff]
      %v897 = vld [vmem:[%s3 + $0x68] sm:$0xff]
      %v898 = vld [vmem:[%s3 + $0x70] sm:$0xff]
      %v899 = vld [vmem:[%s3 + $0x78] sm:$0xff]
      %v900 = vld [vmem:[%s4] sm:$0xff]
      %v901 = vld [vmem:[%s4 + $0x8] sm:$0xff]
      %v902 = vld [vmem:[%s4 + $0x10] sm:$0xff]
      %v903 = vld [vmem:[%s4 + $0x18] sm:$0xff]
      %v904 = vld [vmem:[%s4 + $0x20] sm:$0xff]
      %v905 = vld [vmem:[%s4 + $0x28] sm:$0xff]
      %v906 = vld [vmem:[%s4 + $0x30] sm:$0xff]
      %v907 = vld [vmem:[%s4 + $0x38] sm:$0xff]
      %v908 = vld [vmem:[%s4 + $0x40] sm:$0xff]
      %v909 = vld [vmem:[%s4 + $0x48] sm:$0xff]
      %v910 = vld [vmem:[%s4 + $0x50] sm:$0xff]
      %v911 = vld [vmem:[%s4 + $0x58] sm:$0xff]
      %v912 = vld [vmem:[%s4 + $0x60] sm:$0xff]
      %v913 = vld [vmem:[%s4 + $0x68] sm:$0xff]
      %v914 = vld [vmem:[%s4 + $0x70] sm:$0xff]
      %v915 = vld [vmem:[%s4 + $0x78] sm:$0xff]
      %917 = vset.pattern.permute.xlu0 0
      %918 = vperm.xlu0 %917, %v900
      %v919 = vpop.permute.xlu0 %918
      %922 = vset.pattern.permute.xlu0 0
      %923 = vperm.xlu0 %922, %v901
      %v924 = vpop.permute.xlu0 %923
      %927 = vset.pattern.permute.xlu0 0
      %928 = vperm.xlu0 %927, %v902
      %v929 = vpop.permute.xlu0 %928
      %932 = vset.pattern.permute.xlu0 0
      %933 = vperm.xlu0 %932, %v903
      %v934 = vpop.permute.xlu0 %933
      %937 = vset.pattern.permute.xlu0 0
      %938 = vperm.xlu0 %937, %v904
      %v939 = vpop.permute.xlu0 %938
      %942 = vset.pattern.permute.xlu0 0
      %943 = vperm.xlu0 %942, %v905
      %v944 = vpop.permute.xlu0 %943
      %947 = vset.pattern.permute.xlu0 0
      %948 = vperm.xlu0 %947, %v906
      %v949 = vpop.permute.xlu0 %948
      %952 = vset.pattern.permute.xlu0 0
      %953 = vperm.xlu0 %952, %v907
      %v954 = vpop.permute.xlu0 %953
      %957 = vset.pattern.permute.xlu0 0
      %958 = vperm.xlu0 %957, %v908
      %v959 = vpop.permute.xlu0 %958
      %962 = vset.pattern.permute.xlu0 0
      %963 = vperm.xlu0 %962, %v909
      %v964 = vpop.permute.xlu0 %963
      %967 = vset.pattern.permute.xlu0 0
      %968 = vperm.xlu0 %967, %v910
      %v969 = vpop.permute.xlu0 %968
      %972 = vset.pattern.permute.xlu0 0
      %973 = vperm.xlu0 %972, %v911
      %v974 = vpop.permute.xlu0 %973
      %977 = vset.pattern.permute.xlu0 0
      %978 = vperm.xlu0 %977, %v912
      %v979 = vpop.permute.xlu0 %978
      %982 = vset.pattern.permute.xlu0 0
      %983 = vperm.xlu0 %982, %v913
      %v984 = vpop.permute.xlu0 %983
      %987 = vset.pattern.permute.xlu0 0
      %988 = vperm.xlu0 %987, %v914
      %v989 = vpop.permute.xlu0 %988
      %992 = vset.pattern.permute.xlu0 0
      %993 = vperm.xlu0 %992, %v915
      %v994 = vpop.permute.xlu0 %993
      %v997 = vsel %vm746, %v884, 0
      %v1000 = vsel %vm746, %v885, 0
      %v1003 = vsel %vm746, %v886, 0
      %v1006 = vsel %vm746, %v887, 0
      %v1009 = vsel %vm746, %v888, 0
      %v1012 = vsel %vm746, %v889, 0
      %v1015 = vsel %vm746, %v890, 0
      %v1018 = vsel %vm746, %v891, 0
      %v1021 = vsel %vm746, %v892, 0
      %v1024 = vsel %vm746, %v893, 0
      %v1027 = vsel %vm746, %v894, 0
      %v1030 = vsel %vm746, %v895, 0
      %v1033 = vsel %vm746, %v896, 0
      %v1036 = vsel %vm746, %v897, 0
      %v1039 = vsel %vm746, %v898, 0
      %v1042 = vsel %vm746, %v899, 0
      %1044 = vmatpush.msra.mxu0 0.0
      %1045 = vmatpush.msra.mxu0 0.0
      %1046 = vmatpush.msra.mxu0 0.0
      %1047 = vmatpush.msra.mxu0 0.0
      %1048 = vmatpush.msra.mxu0 0.0
      %1049 = vmatpush.msra.mxu0 0.0
      %1050 = vmatpush.msra.mxu0 0.0
      %1051 = vmatpush.msra.mxu0 0.0
      %1052 = vmatpush.msra.mxu0 %v883
      %1053 = vmatpush.msra.mxu0 %v882
      %1054 = vmatpush.msra.mxu0 %v881
      %1055 = vmatpush.msra.mxu0 %v880
      %1056 = vmatpush.msra.mxu0 %v879
      %1057 = vmatpush.msra.mxu0 %v878
      %1058 = vmatpush.msra.mxu0 %v877
      %1059 = vmatpush.msra.mxu0 %v876
      %1060 = vmatmul.f32.gmra.mxu0 %v997
      %v1061 = vpop.f32.mrf.mxu0
      %v1062 = vadd.f32 %v919, %v1061
      %1063 = vmatmul.f32.gmra.mxu0 %v1000
      %v1064 = vpop.f32.mrf.mxu0
      %v1065 = vadd.f32 %v924, %v1064
      %1066 = vmatmul.f32.gmra.mxu0 %v1003
      %v1067 = vpop.f32.mrf.mxu0
      %v1068 = vadd.f32 %v929, %v1067
      %1069 = vmatmul.f32.gmra.mxu0 %v1006
      %v1070 = vpop.f32.mrf.mxu0
      %v1071 = vadd.f32 %v934, %v1070
      %1072 = vmatmul.f32.gmra.mxu0 %v1009
      %v1073 = vpop.f32.mrf.mxu0
      %v1074 = vadd.f32 %v939, %v1073
      %1075 = vmatmul.f32.gmra.mxu0 %v1012
      %v1076 = vpop.f32.mrf.mxu0
      %v1077 = vadd.f32 %v944, %v1076
      %1078 = vmatmul.f32.gmra.mxu0 %v1015
      %v1079 = vpop.f32.mrf.mxu0
      %v1080 = vadd.f32 %v949, %v1079
      %1081 = vmatmul.f32.gmra.mxu0 %v1018
      %v1082 = vpop.f32.mrf.mxu0
      %v1083 = vadd.f32 %v954, %v1082
      %1084 = vmatmul.f32.gmra.mxu0 %v1021
      %v1085 = vpop.f32.mrf.mxu0
      %v1086 = vadd.f32 %v959, %v1085
      %1087 = vmatmul.f32.gmra.mxu0 %v1024
      %v1088 = vpop.f32.mrf.mxu0
      %v1089 = vadd.f32 %v964, %v1088
      %1090 = vmatmul.f32.gmra.mxu0 %v1027
      %v1091 = vpop.f32.mrf.mxu0
      %v1092 = vadd.f32 %v969, %v1091
      %1093 = vmatmul.f32.gmra.mxu0 %v1030
      %v1094 = vpop.f32.mrf.mxu0
      %v1095 = vadd.f32 %v974, %v1094
      %1096 = vmatmul.f32.gmra.mxu0 %v1033
      %v1097 = vpop.f32.mrf.mxu0
      %v1098 = vadd.f32 %v979, %v1097
      %1099 = vmatmul.f32.gmra.mxu0 %v1036
      %v1100 = vpop.f32.mrf.mxu0
      %v1101 = vadd.f32 %v984, %v1100
      %1102 = vmatmul.f32.gmra.mxu0 %v1039
      %v1103 = vpop.f32.mrf.mxu0
      %v1104 = vadd.f32 %v989, %v1103
      %1105 = vmatmul.f32.gmra.mxu0 %v1042
      %v1106 = vpop.f32.mrf.mxu0
      %v1107 = vadd.f32 %v994, %v1106
      %1108 = vdwg.mxu0
      %v1109 = vmax.f32 %v1062, 0.0
      %v1110 = vmax.f32 %v1065, 0.0
      %v1111 = vmax.f32 %v1068, 0.0
      %v1112 = vmax.f32 %v1071, 0.0
      %v1113 = vmax.f32 %v1074, 0.0
      %v1114 = vmax.f32 %v1077, 0.0
      %v1115 = vmax.f32 %v1080, 0.0
      %v1116 = vmax.f32 %v1083, 0.0
      %v1117 = vmax.f32 %v1086, 0.0
      %v1118 = vmax.f32 %v1089, 0.0
      %v1119 = vmax.f32 %v1092, 0.0
      %v1120 = vmax.f32 %v1095, 0.0
      %v1121 = vmax.f32 %v1098, 0.0
      %v1122 = vmax.f32 %v1101, 0.0
      %v1123 = vmax.f32 %v1104, 0.0
      %v1124 = vmax.f32 %v1107, 0.0
      %v1125 = vmax.f32 %v1109, %v1117
      %v1126 = vmax.f32 %v1110, %v1118
      %v1127 = vmax.f32 %v1111, %v1119
      %v1128 = vmax.f32 %v1112, %v1120
      %v1129 = vmax.f32 %v1113, %v1121
      %v1130 = vmax.f32 %v1114, %v1122
      %v1131 = vmax.f32 %v1115, %v1123
      %v1132 = vmax.f32 %v1116, %v1124
      %v1133 = vld [vmem:[%s5] sm:$0xff]
      %v1134 = vld [vmem:[%s5 + $0x8] sm:$0xff]
      %v1135 = vld [vmem:[%s5 + $0x10] sm:$0xff]
      %v1136 = vld [vmem:[%s5 + $0x18] sm:$0xff]
      %v1137 = vld [vmem:[%s5 + $0x20] sm:$0xff]
      %v1138 = vld [vmem:[%s5 + $0x28] sm:$0xff]
      %v1139 = vld [vmem:[%s5 + $0x30] sm:$0xff]
      %v1140 = vld [vmem:[%s5 + $0x38] sm:$0xff]
      %v1141 = vld [vmem:[%s5 + $0x40] sm:$0xff]
      %v1142 = vld [vmem:[%s5 + $0x48] sm:$0xff]
      %v1143 = vld [vmem:[%s5 + $0x50] sm:$0xff]
      %v1144 = vld [vmem:[%s5 + $0x58] sm:$0xff]
      %v1145 = vld [vmem:[%s5 + $0x60] sm:$0xff]
      %v1146 = vld [vmem:[%s5 + $0x68] sm:$0xff]
      %v1147 = vld [vmem:[%s5 + $0x70] sm:$0xff]
      %v1148 = vld [vmem:[%s5 + $0x78] sm:$0xff]
      %v1149 = vld [vmem:[%s6] sm:$0xff]
      %v1150 = vld [vmem:[%s6 + $0x8] sm:$0xff]
      %v1151 = vld [vmem:[%s6 + $0x10] sm:$0xff]
      %v1152 = vld [vmem:[%s6 + $0x18] sm:$0xff]
      %v1153 = vld [vmem:[%s6 + $0x20] sm:$0xff]
      %v1154 = vld [vmem:[%s6 + $0x28] sm:$0xff]
      %v1155 = vld [vmem:[%s6 + $0x30] sm:$0xff]
      %v1156 = vld [vmem:[%s6 + $0x38] sm:$0xff]
      %v1157 = vld [vmem:[%s6 + $0x40] sm:$0xff]
      %v1158 = vld [vmem:[%s6 + $0x48] sm:$0xff]
      %v1159 = vld [vmem:[%s6 + $0x50] sm:$0xff]
      %v1160 = vld [vmem:[%s6 + $0x58] sm:$0xff]
      %v1161 = vld [vmem:[%s6 + $0x60] sm:$0xff]
      %v1162 = vld [vmem:[%s6 + $0x68] sm:$0xff]
      %v1163 = vld [vmem:[%s6 + $0x70] sm:$0xff]
      %v1164 = vld [vmem:[%s6 + $0x78] sm:$0xff]
      %1166 = vset.pattern.permute.xlu0 0
      %1167 = vperm.xlu0 %1166, %v1149
      %v1168 = vpop.permute.xlu0 %1167
      %1171 = vset.pattern.permute.xlu0 0
      %1172 = vperm.xlu0 %1171, %v1150
      %v1173 = vpop.permute.xlu0 %1172
      %1176 = vset.pattern.permute.xlu0 0
      %1177 = vperm.xlu0 %1176, %v1151
      %v1178 = vpop.permute.xlu0 %1177
      %1181 = vset.pattern.permute.xlu0 0
      %1182 = vperm.xlu0 %1181, %v1152
      %v1183 = vpop.permute.xlu0 %1182
      %1186 = vset.pattern.permute.xlu0 0
      %1187 = vperm.xlu0 %1186, %v1153
      %v1188 = vpop.permute.xlu0 %1187
      %1191 = vset.pattern.permute.xlu0 0
      %1192 = vperm.xlu0 %1191, %v1154
      %v1193 = vpop.permute.xlu0 %1192
      %1196 = vset.pattern.permute.xlu0 0
      %1197 = vperm.xlu0 %1196, %v1155
      %v1198 = vpop.permute.xlu0 %1197
      %1201 = vset.pattern.permute.xlu0 0
      %1202 = vperm.xlu0 %1201, %v1156
      %v1203 = vpop.permute.xlu0 %1202
      %1206 = vset.pattern.permute.xlu0 0
      %1207 = vperm.xlu0 %1206, %v1157
      %v1208 = vpop.permute.xlu0 %1207
      %1211 = vset.pattern.permute.xlu0 0
      %1212 = vperm.xlu0 %1211, %v1158
      %v1213 = vpop.permute.xlu0 %1212
      %1216 = vset.pattern.permute.xlu0 0
      %1217 = vperm.xlu0 %1216, %v1159
      %v1218 = vpop.permute.xlu0 %1217
      %1221 = vset.pattern.permute.xlu0 0
      %1222 = vperm.xlu0 %1221, %v1160
      %v1223 = vpop.permute.xlu0 %1222
      %1226 = vset.pattern.permute.xlu0 0
      %1227 = vperm.xlu0 %1226, %v1161
      %v1228 = vpop.permute.xlu0 %1227
      %1231 = vset.pattern.permute.xlu0 0
      %1232 = vperm.xlu0 %1231, %v1162
      %v1233 = vpop.permute.xlu0 %1232
      %1236 = vset.pattern.permute.xlu0 0
      %1237 = vperm.xlu0 %1236, %v1163
      %v1238 = vpop.permute.xlu0 %1237
      %1241 = vset.pattern.permute.xlu0 0
      %1242 = vperm.xlu0 %1241, %v1164
      %v1243 = vpop.permute.xlu0 %1242
      %v1246 = vsel %vm746, %v1133, 0
      %v1249 = vsel %vm746, %v1134, 0
      %v1252 = vsel %vm746, %v1135, 0
      %v1255 = vsel %vm746, %v1136, 0
      %v1258 = vsel %vm746, %v1137, 0
      %v1261 = vsel %vm746, %v1138, 0
      %v1264 = vsel %vm746, %v1139, 0
      %v1267 = vsel %vm746, %v1140, 0
      %v1270 = vsel %vm746, %v1141, 0
      %v1273 = vsel %vm746, %v1142, 0
      %v1276 = vsel %vm746, %v1143, 0
      %v1279 = vsel %vm746, %v1144, 0
      %v1282 = vsel %vm746, %v1145, 0
      %v1285 = vsel %vm746, %v1146, 0
      %v1288 = vsel %vm746, %v1147, 0
      %v1291 = vsel %vm746, %v1148, 0
      %1293 = vmatpush.msra.mxu0 0.0
      %1294 = vmatpush.msra.mxu0 0.0
      %1295 = vmatpush.msra.mxu0 0.0
      %1296 = vmatpush.msra.mxu0 0.0
      %1297 = vmatpush.msra.mxu0 0.0
      %1298 = vmatpush.msra.mxu0 0.0
      %1299 = vmatpush.msra.mxu0 0.0
      %1300 = vmatpush.msra.mxu0 0.0
      %1301 = vmatpush.msra.mxu0 %v1132
      %1302 = vmatpush.msra.mxu0 %v1131
      %1303 = vmatpush.msra.mxu0 %v1130
      %1304 = vmatpush.msra.mxu0 %v1129
      %1305 = vmatpush.msra.mxu0 %v1128
      %1306 = vmatpush.msra.mxu0 %v1127
      %1307 = vmatpush.msra.mxu0 %v1126
      %1308 = vmatpush.msra.mxu0 %v1125
      %1309 = vmatmul.f32.gmra.mxu0 %v1246
      %v1310 = vpop.f32.mrf.mxu0
      %v1311 = vadd.f32 %v1168, %v1310
      %1312 = vmatmul.f32.gmra.mxu0 %v1249
      %v1313 = vpop.f32.mrf.mxu0
      %v1314 = vadd.f32 %v1173, %v1313
      %1315 = vmatmul.f32.gmra.mxu0 %v1252
      %v1316 = vpop.f32.mrf.mxu0
      %v1317 = vadd.f32 %v1178, %v1316
      %1318 = vmatmul.f32.gmra.mxu0 %v1255
      %v1319 = vpop.f32.mrf.mxu0
      %v1320 = vadd.f32 %v1183, %v1319
      %1321 = vmatmul.f32.gmra.mxu0 %v1258
      %v1322 = vpop.f32.mrf.mxu0
      %v1323 = vadd.f32 %v1188, %v1322
      %1324 = vmatmul.f32.gmra.mxu0 %v1261
      %v1325 = vpop.f32.mrf.mxu0
      %v1326 = vadd.f32 %v1193, %v1325
      %1327 = vmatmul.f32.gmra.mxu0 %v1264
      %v1328 = vpop.f32.mrf.mxu0
      %v1329 = vadd.f32 %v1198, %v1328
      %1330 = vmatmul.f32.gmra.mxu0 %v1267
      %v1331 = vpop.f32.mrf.mxu0
      %v1332 = vadd.f32 %v1203, %v1331
      %1333 = vmatmul.f32.gmra.mxu0 %v1270
      %v1334 = vpop.f32.mrf.mxu0
      %v1335 = vadd.f32 %v1208, %v1334
      %1336 = vmatmul.f32.gmra.mxu0 %v1273
      %v1337 = vpop.f32.mrf.mxu0
      %v1338 = vadd.f32 %v1213, %v1337
      %1339 = vmatmul.f32.gmra.mxu0 %v1276
      %v1340 = vpop.f32.mrf.mxu0
      %v1341 = vadd.f32 %v1218, %v1340
      %1342 = vmatmul.f32.gmra.mxu0 %v1279
      %v1343 = vpop.f32.mrf.mxu0
      %v1344 = vadd.f32 %v1223, %v1343
      %1345 = vmatmul.f32.gmra.mxu0 %v1282
      %v1346 = vpop.f32.mrf.mxu0
      %v1347 = vadd.f32 %v1228, %v1346
      %1348 = vmatmul.f32.gmra.mxu0 %v1285
      %v1349 = vpop.f32.mrf.mxu0
      %v1350 = vadd.f32 %v1233, %v1349
      %1351 = vmatmul.f32.gmra.mxu0 %v1288
      %v1352 = vpop.f32.mrf.mxu0
      %v1353 = vadd.f32 %v1238, %v1352
      %1354 = vmatmul.f32.gmra.mxu0 %v1291
      %v1355 = vpop.f32.mrf.mxu0
      %v1356 = vadd.f32 %v1243, %v1355
      %1357 = vdwg.mxu0
      %v1358 = vmax.f32 %v1311, 0.0
      %v1359 = vmax.f32 %v1314, 0.0
      %v1360 = vmax.f32 %v1317, 0.0
      %v1361 = vmax.f32 %v1320, 0.0
      %v1362 = vmax.f32 %v1323, 0.0
      %v1363 = vmax.f32 %v1326, 0.0
      %v1364 = vmax.f32 %v1329, 0.0
      %v1365 = vmax.f32 %v1332, 0.0
      %v1366 = vmax.f32 %v1335, 0.0
      %v1367 = vmax.f32 %v1338, 0.0
      %v1368 = vmax.f32 %v1341, 0.0
      %v1369 = vmax.f32 %v1344, 0.0
      %v1370 = vmax.f32 %v1347, 0.0
      %v1371 = vmax.f32 %v1350, 0.0
      %v1372 = vmax.f32 %v1353, 0.0
      %v1373 = vmax.f32 %v1356, 0.0
      %v1374 = vmax.f32 %v1358, %v1366
      %v1375 = vmax.f32 %v1359, %v1367
      %v1376 = vmax.f32 %v1360, %v1368
      %v1377 = vmax.f32 %v1361, %v1369
      %v1378 = vmax.f32 %v1362, %v1370
      %v1379 = vmax.f32 %v1363, %v1371
      %v1380 = vmax.f32 %v1364, %v1372
      %v1381 = vmax.f32 %v1365, %v1373
      %v1382 = vld [vmem:[%s7] sm:$0xff]
      %v1383 = vld [vmem:[%s7 + $0x8] sm:$0xff]
      %v1384 = vld [vmem:[%s7 + $0x10] sm:$0xff]
      %v1385 = vld [vmem:[%s7 + $0x18] sm:$0xff]
      %v1386 = vld [vmem:[%s7 + $0x20] sm:$0xff]
      %v1387 = vld [vmem:[%s7 + $0x28] sm:$0xff]
      %v1388 = vld [vmem:[%s7 + $0x30] sm:$0xff]
      %v1389 = vld [vmem:[%s7 + $0x38] sm:$0xff]
      %v1390 = vld [vmem:[%s7 + $0x40] sm:$0xff]
      %v1391 = vld [vmem:[%s7 + $0x48] sm:$0xff]
      %v1392 = vld [vmem:[%s7 + $0x50] sm:$0xff]
      %v1393 = vld [vmem:[%s7 + $0x58] sm:$0xff]
      %v1394 = vld [vmem:[%s7 + $0x60] sm:$0xff]
      %v1395 = vld [vmem:[%s7 + $0x68] sm:$0xff]
      %v1396 = vld [vmem:[%s7 + $0x70] sm:$0xff]
      %v1397 = vld [vmem:[%s7 + $0x78] sm:$0xff]
      %v1398 = vld [vmem:[%s8] sm:$0xff]
      %v1399 = vld [vmem:[%s8 + $0x8] sm:$0xff]
      %v1400 = vld [vmem:[%s8 + $0x10] sm:$0xff]
      %v1401 = vld [vmem:[%s8 + $0x18] sm:$0xff]
      %v1402 = vld [vmem:[%s8 + $0x20] sm:$0xff]
      %v1403 = vld [vmem:[%s8 + $0x28] sm:$0xff]
      %v1404 = vld [vmem:[%s8 + $0x30] sm:$0xff]
      %v1405 = vld [vmem:[%s8 + $0x38] sm:$0xff]
      %v1406 = vld [vmem:[%s8 + $0x40] sm:$0xff]
      %v1407 = vld [vmem:[%s8 + $0x48] sm:$0xff]
      %v1408 = vld [vmem:[%s8 + $0x50] sm:$0xff]
      %v1409 = vld [vmem:[%s8 + $0x58] sm:$0xff]
      %v1410 = vld [vmem:[%s8 + $0x60] sm:$0xff]
      %v1411 = vld [vmem:[%s8 + $0x68] sm:$0xff]
      %v1412 = vld [vmem:[%s8 + $0x70] sm:$0xff]
      %v1413 = vld [vmem:[%s8 + $0x78] sm:$0xff]
      %1415 = vset.pattern.permute.xlu0 0
      %1416 = vperm.xlu0 %1415, %v1398
      %v1417 = vpop.permute.xlu0 %1416
      %1420 = vset.pattern.permute.xlu0 0
      %1421 = vperm.xlu0 %1420, %v1399
      %v1422 = vpop.permute.xlu0 %1421
      %1425 = vset.pattern.permute.xlu0 0
      %1426 = vperm.xlu0 %1425, %v1400
      %v1427 = vpop.permute.xlu0 %1426
      %1430 = vset.pattern.permute.xlu0 0
      %1431 = vperm.xlu0 %1430, %v1401
      %v1432 = vpop.permute.xlu0 %1431
      %1435 = vset.pattern.permute.xlu0 0
      %1436 = vperm.xlu0 %1435, %v1402
      %v1437 = vpop.permute.xlu0 %1436
      %1440 = vset.pattern.permute.xlu0 0
      %1441 = vperm.xlu0 %1440, %v1403
      %v1442 = vpop.permute.xlu0 %1441
      %1445 = vset.pattern.permute.xlu0 0
      %1446 = vperm.xlu0 %1445, %v1404
      %v1447 = vpop.permute.xlu0 %1446
      %1450 = vset.pattern.permute.xlu0 0
      %1451 = vperm.xlu0 %1450, %v1405
      %v1452 = vpop.permute.xlu0 %1451
      %1455 = vset.pattern.permute.xlu0 0
      %1456 = vperm.xlu0 %1455, %v1406
      %v1457 = vpop.permute.xlu0 %1456
      %1460 = vset.pattern.permute.xlu0 0
      %1461 = vperm.xlu0 %1460, %v1407
      %v1462 = vpop.permute.xlu0 %1461
      %1465 = vset.pattern.permute.xlu0 0
      %1466 = vperm.xlu0 %1465, %v1408
      %v1467 = vpop.permute.xlu0 %1466
      %1470 = vset.pattern.permute.xlu0 0
      %1471 = vperm.xlu0 %1470, %v1409
      %v1472 = vpop.permute.xlu0 %1471
      %1475 = vset.pattern.permute.xlu0 0
      %1476 = vperm.xlu0 %1475, %v1410
      %v1477 = vpop.permute.xlu0 %1476
      %1480 = vset.pattern.permute.xlu0 0
      %1481 = vperm.xlu0 %1480, %v1411
      %v1482 = vpop.permute.xlu0 %1481
      %1485 = vset.pattern.permute.xlu0 0
      %1486 = vperm.xlu0 %1485, %v1412
      %v1487 = vpop.permute.xlu0 %1486
      %1490 = vset.pattern.permute.xlu0 0
      %1491 = vperm.xlu0 %1490, %v1413
      %v1492 = vpop.permute.xlu0 %1491
      %v1495 = vsel %vm746, %v1382, 0
      %v1498 = vsel %vm746, %v1383, 0
      %v1501 = vsel %vm746, %v1384, 0
      %v1504 = vsel %vm746, %v1385, 0
      %v1507 = vsel %vm746, %v1386, 0
      %v1510 = vsel %vm746, %v1387, 0
      %v1513 = vsel %vm746, %v1388, 0
      %v1516 = vsel %vm746, %v1389, 0
      %v1519 = vsel %vm746, %v1390, 0
      %v1522 = vsel %vm746, %v1391, 0
      %v1525 = vsel %vm746, %v1392, 0
      %v1528 = vsel %vm746, %v1393, 0
      %v1531 = vsel %vm746, %v1394, 0
      %v1534 = vsel %vm746, %v1395, 0
      %v1537 = vsel %vm746, %v1396, 0
      %v1540 = vsel %vm746, %v1397, 0
      %1542 = vmatpush.msra.mxu0 0.0
      %1543 = vmatpush.msra.mxu0 0.0
      %1544 = vmatpush.msra.mxu0 0.0
      %1545 = vmatpush.msra.mxu0 0.0
      %1546 = vmatpush.msra.mxu0 0.0
      %1547 = vmatpush.msra.mxu0 0.0
      %1548 = vmatpush.msra.mxu0 0.0
      %1549 = vmatpush.msra.mxu0 0.0
      %1550 = vmatpush.msra.mxu0 %v1381
      %1551 = vmatpush.msra.mxu0 %v1380
      %1552 = vmatpush.msra.mxu0 %v1379
      %1553 = vmatpush.msra.mxu0 %v1378
      %1554 = vmatpush.msra.mxu0 %v1377
      %1555 = vmatpush.msra.mxu0 %v1376
      %1556 = vmatpush.msra.mxu0 %v1375
      %1557 = vmatpush.msra.mxu0 %v1374
      %1558 = vmatmul.f32.gmra.mxu0 %v1495
      %v1559 = vpop.f32.mrf.mxu0
      %v1560 = vadd.f32 %v1417, %v1559
      %1561 = vmatmul.f32.gmra.mxu0 %v1498
      %v1562 = vpop.f32.mrf.mxu0
      %v1563 = vadd.f32 %v1422, %v1562
      %1564 = vmatmul.f32.gmra.mxu0 %v1501
      %v1565 = vpop.f32.mrf.mxu0
      %v1566 = vadd.f32 %v1427, %v1565
      %1567 = vmatmul.f32.gmra.mxu0 %v1504
      %v1568 = vpop.f32.mrf.mxu0
      %v1569 = vadd.f32 %v1432, %v1568
      %1570 = vmatmul.f32.gmra.mxu0 %v1507
      %v1571 = vpop.f32.mrf.mxu0
      %v1572 = vadd.f32 %v1437, %v1571
      %1573 = vmatmul.f32.gmra.mxu0 %v1510
      %v1574 = vpop.f32.mrf.mxu0
      %v1575 = vadd.f32 %v1442, %v1574
      %1576 = vmatmul.f32.gmra.mxu0 %v1513
      %v1577 = vpop.f32.mrf.mxu0
      %v1578 = vadd.f32 %v1447, %v1577
      %1579 = vmatmul.f32.gmra.mxu0 %v1516
      %v1580 = vpop.f32.mrf.mxu0
      %v1581 = vadd.f32 %v1452, %v1580
      %1582 = vmatmul.f32.gmra.mxu0 %v1519
      %v1583 = vpop.f32.mrf.mxu0
      %v1584 = vadd.f32 %v1457, %v1583
      %1585 = vmatmul.f32.gmra.mxu0 %v1522
      %v1586 = vpop.f32.mrf.mxu0
      %v1587 = vadd.f32 %v1462, %v1586
      %1588 = vmatmul.f32.gmra.mxu0 %v1525
      %v1589 = vpop.f32.mrf.mxu0
      %v1590 = vadd.f32 %v1467, %v1589
      %1591 = vmatmul.f32.gmra.mxu0 %v1528
      %v1592 = vpop.f32.mrf.mxu0
      %v1593 = vadd.f32 %v1472, %v1592
      %1594 = vmatmul.f32.gmra.mxu0 %v1531
      %v1595 = vpop.f32.mrf.mxu0
      %v1596 = vadd.f32 %v1477, %v1595
      %1597 = vmatmul.f32.gmra.mxu0 %v1534
      %v1598 = vpop.f32.mrf.mxu0
      %v1599 = vadd.f32 %v1482, %v1598
      %1600 = vmatmul.f32.gmra.mxu0 %v1537
      %v1601 = vpop.f32.mrf.mxu0
      %v1602 = vadd.f32 %v1487, %v1601
      %1603 = vmatmul.f32.gmra.mxu0 %v1540
      %v1604 = vpop.f32.mrf.mxu0
      %v1605 = vadd.f32 %v1492, %v1604
      %1606 = vdwg.mxu0
      %v1607 = vmax.f32 %v1560, 0.0
      %v1608 = vmax.f32 %v1563, 0.0
      %v1609 = vmax.f32 %v1566, 0.0
      %v1610 = vmax.f32 %v1569, 0.0
      %v1611 = vmax.f32 %v1572, 0.0
      %v1612 = vmax.f32 %v1575, 0.0
      %v1613 = vmax.f32 %v1578, 0.0
      %v1614 = vmax.f32 %v1581, 0.0
      %v1615 = vmax.f32 %v1584, 0.0
      %v1616 = vmax.f32 %v1587, 0.0
      %v1617 = vmax.f32 %v1590, 0.0
      %v1618 = vmax.f32 %v1593, 0.0
      %v1619 = vmax.f32 %v1596, 0.0
      %v1620 = vmax.f32 %v1599, 0.0
      %v1621 = vmax.f32 %v1602, 0.0
      %v1622 = vmax.f32 %v1605, 0.0
      %v1623 = vmax.f32 %v1607, %v1615
      %v1624 = vmax.f32 %v1608, %v1616
      %v1625 = vmax.f32 %v1609, %v1617
      %v1626 = vmax.f32 %v1610, %v1618
      %v1627 = vmax.f32 %v1611, %v1619
      %v1628 = vmax.f32 %v1612, %v1620
      %v1629 = vmax.f32 %v1613, %v1621
      %v1630 = vmax.f32 %v1614, %v1622
      %v1631 = vld [vmem:[%s9] sm:$0xff]
      %v1632 = vld [vmem:[%s9 + $0x8] sm:$0xff]
      %v1633 = vld [vmem:[%s9 + $0x10] sm:$0xff]
      %v1634 = vld [vmem:[%s9 + $0x18] sm:$0xff]
      %v1635 = vld [vmem:[%s9 + $0x20] sm:$0xff]
      %v1636 = vld [vmem:[%s9 + $0x28] sm:$0xff]
      %v1637 = vld [vmem:[%s9 + $0x30] sm:$0xff]
      %v1638 = vld [vmem:[%s9 + $0x38] sm:$0xff]
      %v1639 = vld [vmem:[%s9 + $0x40] sm:$0xff]
      %v1640 = vld [vmem:[%s9 + $0x48] sm:$0xff]
      %v1641 = vld [vmem:[%s9 + $0x50] sm:$0xff]
      %v1642 = vld [vmem:[%s9 + $0x58] sm:$0xff]
      %v1643 = vld [vmem:[%s9 + $0x60] sm:$0xff]
      %v1644 = vld [vmem:[%s9 + $0x68] sm:$0xff]
      %v1645 = vld [vmem:[%s9 + $0x70] sm:$0xff]
      %v1646 = vld [vmem:[%s9 + $0x78] sm:$0xff]
      %v1647 = vld [vmem:[%s10] sm:$0xff]
      %v1648 = vld [vmem:[%s10 + $0x8] sm:$0xff]
      %v1649 = vld [vmem:[%s10 + $0x10] sm:$0xff]
      %v1650 = vld [vmem:[%s10 + $0x18] sm:$0xff]
      %v1651 = vld [vmem:[%s10 + $0x20] sm:$0xff]
      %v1652 = vld [vmem:[%s10 + $0x28] sm:$0xff]
      %v1653 = vld [vmem:[%s10 + $0x30] sm:$0xff]
      %v1654 = vld [vmem:[%s10 + $0x38] sm:$0xff]
      %v1655 = vld [vmem:[%s10 + $0x40] sm:$0xff]
      %v1656 = vld [vmem:[%s10 + $0x48] sm:$0xff]
      %v1657 = vld [vmem:[%s10 + $0x50] sm:$0xff]
      %v1658 = vld [vmem:[%s10 + $0x58] sm:$0xff]
      %v1659 = vld [vmem:[%s10 + $0x60] sm:$0xff]
      %v1660 = vld [vmem:[%s10 + $0x68] sm:$0xff]
      %v1661 = vld [vmem:[%s10 + $0x70] sm:$0xff]
      %v1662 = vld [vmem:[%s10 + $0x78] sm:$0xff]
      %1664 = vset.pattern.permute.xlu0 0
      %1665 = vperm.xlu0 %1664, %v1647
      %v1666 = vpop.permute.xlu0 %1665
      %1669 = vset.pattern.permute.xlu0 0
      %1670 = vperm.xlu0 %1669, %v1648
      %v1671 = vpop.permute.xlu0 %1670
      %1674 = vset.pattern.permute.xlu0 0
      %1675 = vperm.xlu0 %1674, %v1649
      %v1676 = vpop.permute.xlu0 %1675
      %1679 = vset.pattern.permute.xlu0 0
      %1680 = vperm.xlu0 %1679, %v1650
      %v1681 = vpop.permute.xlu0 %1680
      %1684 = vset.pattern.permute.xlu0 0
      %1685 = vperm.xlu0 %1684, %v1651
      %v1686 = vpop.permute.xlu0 %1685
      %1689 = vset.pattern.permute.xlu0 0
      %1690 = vperm.xlu0 %1689, %v1652
      %v1691 = vpop.permute.xlu0 %1690
      %1694 = vset.pattern.permute.xlu0 0
      %1695 = vperm.xlu0 %1694, %v1653
      %v1696 = vpop.permute.xlu0 %1695
      %1699 = vset.pattern.permute.xlu0 0
      %1700 = vperm.xlu0 %1699, %v1654
      %v1701 = vpop.permute.xlu0 %1700
      %1704 = vset.pattern.permute.xlu0 0
      %1705 = vperm.xlu0 %1704, %v1655
      %v1706 = vpop.permute.xlu0 %1705
      %1709 = vset.pattern.permute.xlu0 0
      %1710 = vperm.xlu0 %1709, %v1656
      %v1711 = vpop.permute.xlu0 %1710
      %1714 = vset.pattern.permute.xlu0 0
      %1715 = vperm.xlu0 %1714, %v1657
      %v1716 = vpop.permute.xlu0 %1715
      %1719 = vset.pattern.permute.xlu0 0
      %1720 = vperm.xlu0 %1719, %v1658
      %v1721 = vpop.permute.xlu0 %1720
      %1724 = vset.pattern.permute.xlu0 0
      %1725 = vperm.xlu0 %1724, %v1659
      %v1726 = vpop.permute.xlu0 %1725
      %1729 = vset.pattern.permute.xlu0 0
      %1730 = vperm.xlu0 %1729, %v1660
      %v1731 = vpop.permute.xlu0 %1730
      %1734 = vset.pattern.permute.xlu0 0
      %1735 = vperm.xlu0 %1734, %v1661
      %v1736 = vpop.permute.xlu0 %1735
      %1739 = vset.pattern.permute.xlu0 0
      %1740 = vperm.xlu0 %1739, %v1662
      %v1741 = vpop.permute.xlu0 %1740
      %v1744 = vsel %vm746, %v1631, 0
      %v1747 = vsel %vm746, %v1632, 0
      %v1750 = vsel %vm746, %v1633, 0
      %v1753 = vsel %vm746, %v1634, 0
      %v1756 = vsel %vm746, %v1635, 0
      %v1759 = vsel %vm746, %v1636, 0
      %v1762 = vsel %vm746, %v1637, 0
      %v1765 = vsel %vm746, %v1638, 0
      %v1768 = vsel %vm746, %v1639, 0
      %v1771 = vsel %vm746, %v1640, 0
      %v1774 = vsel %vm746, %v1641, 0
      %v1777 = vsel %vm746, %v1642, 0
      %v1780 = vsel %vm746, %v1643, 0
      %v1783 = vsel %vm746, %v1644, 0
      %v1786 = vsel %vm746, %v1645, 0
      %v1789 = vsel %vm746, %v1646, 0
      %1791 = vmatpush.msra.mxu0 0.0
      %1792 = vmatpush.msra.mxu0 0.0
      %1793 = vmatpush.msra.mxu0 0.0
      %1794 = vmatpush.msra.mxu0 0.0
      %1795 = vmatpush.msra.mxu0 0.0
      %1796 = vmatpush.msra.mxu0 0.0
      %1797 = vmatpush.msra.mxu0 0.0
      %1798 = vmatpush.msra.mxu0 0.0
      %1799 = vmatpush.msra.mxu0 %v1630
      %1800 = vmatpush.msra.mxu0 %v1629
      %1801 = vmatpush.msra.mxu0 %v1628
      %1802 = vmatpush.msra.mxu0 %v1627
      %1803 = vmatpush.msra.mxu0 %v1626
      %1804 = vmatpush.msra.mxu0 %v1625
      %1805 = vmatpush.msra.mxu0 %v1624
      %1806 = vmatpush.msra.mxu0 %v1623
      %1807 = vmatmul.f32.gmra.mxu0 %v1744
      %v1808 = vpop.f32.mrf.mxu0
      %v1809 = vadd.f32 %v1666, %v1808
      %1810 = vmatmul.f32.gmra.mxu0 %v1747
      %v1811 = vpop.f32.mrf.mxu0
      %v1812 = vadd.f32 %v1671, %v1811
      %1813 = vmatmul.f32.gmra.mxu0 %v1750
      %v1814 = vpop.f32.mrf.mxu0
      %v1815 = vadd.f32 %v1676, %v1814
      %1816 = vmatmul.f32.gmra.mxu0 %v1753
      %v1817 = vpop.f32.mrf.mxu0
      %v1818 = vadd.f32 %v1681, %v1817
      %1819 = vmatmul.f32.gmra.mxu0 %v1756
      %v1820 = vpop.f32.mrf.mxu0
      %v1821 = vadd.f32 %v1686, %v1820
      %1822 = vmatmul.f32.gmra.mxu0 %v1759
      %v1823 = vpop.f32.mrf.mxu0
      %v1824 = vadd.f32 %v1691, %v1823
      %1825 = vmatmul.f32.gmra.mxu0 %v1762
      %v1826 = vpop.f32.mrf.mxu0
      %v1827 = vadd.f32 %v1696, %v1826
      %1828 = vmatmul.f32.gmra.mxu0 %v1765
      %v1829 = vpop.f32.mrf.mxu0
      %v1830 = vadd.f32 %v1701, %v1829
      %1831 = vmatmul.f32.gmra.mxu0 %v1768
      %v1832 = vpop.f32.mrf.mxu0
      %v1833 = vadd.f32 %v1706, %v1832
      %1834 = vmatmul.f32.gmra.mxu0 %v1771
      %v1835 = vpop.f32.mrf.mxu0
      %v1836 = vadd.f32 %v1711, %v1835
      %1837 = vmatmul.f32.gmra.mxu0 %v1774
      %v1838 = vpop.f32.mrf.mxu0
      %v1839 = vadd.f32 %v1716, %v1838
      %1840 = vmatmul.f32.gmra.mxu0 %v1777
      %v1841 = vpop.f32.mrf.mxu0
      %v1842 = vadd.f32 %v1721, %v1841
      %1843 = vmatmul.f32.gmra.mxu0 %v1780
      %v1844 = vpop.f32.mrf.mxu0
      %v1845 = vadd.f32 %v1726, %v1844
      %1846 = vmatmul.f32.gmra.mxu0 %v1783
      %v1847 = vpop.f32.mrf.mxu0
      %v1848 = vadd.f32 %v1731, %v1847
      %1849 = vmatmul.f32.gmra.mxu0 %v1786
      %v1850 = vpop.f32.mrf.mxu0
      %v1851 = vadd.f32 %v1736, %v1850
      %1852 = vmatmul.f32.gmra.mxu0 %v1789
      %v1853 = vpop.f32.mrf.mxu0
      %v1854 = vadd.f32 %v1741, %v1853
      %1855 = vdwg.mxu0
      %v1856 = vmax.f32 %v1809, 0.0
      %v1857 = vmax.f32 %v1812, 0.0
      %v1858 = vmax.f32 %v1815, 0.0
      %v1859 = vmax.f32 %v1818, 0.0
      %v1860 = vmax.f32 %v1821, 0.0
      %v1861 = vmax.f32 %v1824, 0.0
      %v1862 = vmax.f32 %v1827, 0.0
      %v1863 = vmax.f32 %v1830, 0.0
      %v1864 = vmax.f32 %v1833, 0.0
      %v1865 = vmax.f32 %v1836, 0.0
      %v1866 = vmax.f32 %v1839, 0.0
      %v1867 = vmax.f32 %v1842, 0.0
      %v1868 = vmax.f32 %v1845, 0.0
      %v1869 = vmax.f32 %v1848, 0.0
      %v1870 = vmax.f32 %v1851, 0.0
      %v1871 = vmax.f32 %v1854, 0.0
      %v1872 = vmax.f32 %v1856, %v1864
      %v1873 = vmax.f32 %v1857, %v1865
      %v1874 = vmax.f32 %v1858, %v1866
      %v1875 = vmax.f32 %v1859, %v1867
      %v1876 = vmax.f32 %v1860, %v1868
      %v1877 = vmax.f32 %v1861, %v1869
      %v1878 = vmax.f32 %v1862, %v1870
      %v1879 = vmax.f32 %v1863, %v1871
      %v1880 = vld [vmem:[%s11] sm:$0xff]
      %v1881 = vld [vmem:[%s11 + $0x8] sm:$0xff]
      %v1882 = vld [vmem:[%s11 + $0x10] sm:$0xff]
      %v1883 = vld [vmem:[%s11 + $0x18] sm:$0xff]
      %v1884 = vld [vmem:[%s11 + $0x20] sm:$0xff]
      %v1885 = vld [vmem:[%s11 + $0x28] sm:$0xff]
      %v1886 = vld [vmem:[%s11 + $0x30] sm:$0xff]
      %v1887 = vld [vmem:[%s11 + $0x38] sm:$0xff]
      %v1888 = vld [vmem:[%s11 + $0x40] sm:$0xff]
      %v1889 = vld [vmem:[%s11 + $0x48] sm:$0xff]
      %v1890 = vld [vmem:[%s11 + $0x50] sm:$0xff]
      %v1891 = vld [vmem:[%s11 + $0x58] sm:$0xff]
      %v1892 = vld [vmem:[%s11 + $0x60] sm:$0xff]
      %v1893 = vld [vmem:[%s11 + $0x68] sm:$0xff]
      %v1894 = vld [vmem:[%s11 + $0x70] sm:$0xff]
      %v1895 = vld [vmem:[%s11 + $0x78] sm:$0xff]
      %v1896 = vld [vmem:[%s12] sm:$0xff]
      %v1897 = vld [vmem:[%s12 + $0x8] sm:$0xff]
      %v1898 = vld [vmem:[%s12 + $0x10] sm:$0xff]
      %v1899 = vld [vmem:[%s12 + $0x18] sm:$0xff]
      %v1900 = vld [vmem:[%s12 + $0x20] sm:$0xff]
      %v1901 = vld [vmem:[%s12 + $0x28] sm:$0xff]
      %v1902 = vld [vmem:[%s12 + $0x30] sm:$0xff]
      %v1903 = vld [vmem:[%s12 + $0x38] sm:$0xff]
      %v1904 = vld [vmem:[%s12 + $0x40] sm:$0xff]
      %v1905 = vld [vmem:[%s12 + $0x48] sm:$0xff]
      %v1906 = vld [vmem:[%s12 + $0x50] sm:$0xff]
      %v1907 = vld [vmem:[%s12 + $0x58] sm:$0xff]
      %v1908 = vld [vmem:[%s12 + $0x60] sm:$0xff]
      %v1909 = vld [vmem:[%s12 + $0x68] sm:$0xff]
      %v1910 = vld [vmem:[%s12 + $0x70] sm:$0xff]
      %v1911 = vld [vmem:[%s12 + $0x78] sm:$0xff]
      %1913 = vset.pattern.permute.xlu0 0
      %1914 = vperm.xlu0 %1913, %v1896
      %v1915 = vpop.permute.xlu0 %1914
      %1918 = vset.pattern.permute.xlu0 0
      %1919 = vperm.xlu0 %1918, %v1897
      %v1920 = vpop.permute.xlu0 %1919
      %1923 = vset.pattern.permute.xlu0 0
      %1924 = vperm.xlu0 %1923, %v1898
      %v1925 = vpop.permute.xlu0 %1924
      %1928 = vset.pattern.permute.xlu0 0
      %1929 = vperm.xlu0 %1928, %v1899
      %v1930 = vpop.permute.xlu0 %1929
      %1933 = vset.pattern.permute.xlu0 0
      %1934 = vperm.xlu0 %1933, %v1900
      %v1935 = vpop.permute.xlu0 %1934
      %1938 = vset.pattern.permute.xlu0 0
      %1939 = vperm.xlu0 %1938, %v1901
      %v1940 = vpop.permute.xlu0 %1939
      %1943 = vset.pattern.permute.xlu0 0
      %1944 = vperm.xlu0 %1943, %v1902
      %v1945 = vpop.permute.xlu0 %1944
      %1948 = vset.pattern.permute.xlu0 0
      %1949 = vperm.xlu0 %1948, %v1903
      %v1950 = vpop.permute.xlu0 %1949
      %1953 = vset.pattern.permute.xlu0 0
      %1954 = vperm.xlu0 %1953, %v1904
      %v1955 = vpop.permute.xlu0 %1954
      %1958 = vset.pattern.permute.xlu0 0
      %1959 = vperm.xlu0 %1958, %v1905
      %v1960 = vpop.permute.xlu0 %1959
      %1963 = vset.pattern.permute.xlu0 0
      %1964 = vperm.xlu0 %1963, %v1906
      %v1965 = vpop.permute.xlu0 %1964
      %1968 = vset.pattern.permute.xlu0 0
      %1969 = vperm.xlu0 %1968, %v1907
      %v1970 = vpop.permute.xlu0 %1969
      %1973 = vset.pattern.permute.xlu0 0
      %1974 = vperm.xlu0 %1973, %v1908
      %v1975 = vpop.permute.xlu0 %1974
      %1978 = vset.pattern.permute.xlu0 0
      %1979 = vperm.xlu0 %1978, %v1909
      %v1980 = vpop.permute.xlu0 %1979
      %1983 = vset.pattern.permute.xlu0 0
      %1984 = vperm.xlu0 %1983, %v1910
      %v1985 = vpop.permute.xlu0 %1984
      %1988 = vset.pattern.permute.xlu0 0
      %1989 = vperm.xlu0 %1988, %v1911
      %v1990 = vpop.permute.xlu0 %1989
      %v1993 = vsel %vm746, %v1880, 0
      %v1996 = vsel %vm746, %v1881, 0
      %v1999 = vsel %vm746, %v1882, 0
      %v2002 = vsel %vm746, %v1883, 0
      %v2005 = vsel %vm746, %v1884, 0
      %v2008 = vsel %vm746, %v1885, 0
      %v2011 = vsel %vm746, %v1886, 0
      %v2014 = vsel %vm746, %v1887, 0
      %v2017 = vsel %vm746, %v1888, 0
      %v2020 = vsel %vm746, %v1889, 0
      %v2023 = vsel %vm746, %v1890, 0
      %v2026 = vsel %vm746, %v1891, 0
      %v2029 = vsel %vm746, %v1892, 0
      %v2032 = vsel %vm746, %v1893, 0
      %v2035 = vsel %vm746, %v1894, 0
      %v2038 = vsel %vm746, %v1895, 0
      %2040 = vmatpush.msra.mxu0 0.0
      %2041 = vmatpush.msra.mxu0 0.0
      %2042 = vmatpush.msra.mxu0 0.0
      %2043 = vmatpush.msra.mxu0 0.0
      %2044 = vmatpush.msra.mxu0 0.0
      %2045 = vmatpush.msra.mxu0 0.0
      %2046 = vmatpush.msra.mxu0 0.0
      %2047 = vmatpush.msra.mxu0 0.0
      %2048 = vmatpush.msra.mxu0 %v1879
      %2049 = vmatpush.msra.mxu0 %v1878
      %2050 = vmatpush.msra.mxu0 %v1877
      %2051 = vmatpush.msra.mxu0 %v1876
      %2052 = vmatpush.msra.mxu0 %v1875
      %2053 = vmatpush.msra.mxu0 %v1874
      %2054 = vmatpush.msra.mxu0 %v1873
      %2055 = vmatpush.msra.mxu0 %v1872
      %2056 = vmatmul.f32.gmra.mxu0 %v1993
      %v2057 = vpop.f32.mrf.mxu0
      %v2058 = vadd.f32 %v1915, %v2057
      %2059 = vmatmul.f32.gmra.mxu0 %v1996
      %v2060 = vpop.f32.mrf.mxu0
      %v2061 = vadd.f32 %v1920, %v2060
      %2062 = vmatmul.f32.gmra.mxu0 %v1999
      %v2063 = vpop.f32.mrf.mxu0
      %v2064 = vadd.f32 %v1925, %v2063
      %2065 = vmatmul.f32.gmra.mxu0 %v2002
      %v2066 = vpop.f32.mrf.mxu0
      %v2067 = vadd.f32 %v1930, %v2066
      %2068 = vmatmul.f32.gmra.mxu0 %v2005
      %v2069 = vpop.f32.mrf.mxu0
      %v2070 = vadd.f32 %v1935, %v2069
      %2071 = vmatmul.f32.gmra.mxu0 %v2008
      %v2072 = vpop.f32.mrf.mxu0
      %v2073 = vadd.f32 %v1940, %v2072
      %2074 = vmatmul.f32.gmra.mxu0 %v2011
      %v2075 = vpop.f32.mrf.mxu0
      %v2076 = vadd.f32 %v1945, %v2075
      %2077 = vmatmul.f32.gmra.mxu0 %v2014
      %v2078 = vpop.f32.mrf.mxu0
      %v2079 = vadd.f32 %v1950, %v2078
      %2080 = vmatmul.f32.gmra.mxu0 %v2017
      %v2081 = vpop.f32.mrf.mxu0
      %v2082 = vadd.f32 %v1955, %v2081
      %2083 = vmatmul.f32.gmra.mxu0 %v2020
      %v2084 = vpop.f32.mrf.mxu0
      %v2085 = vadd.f32 %v1960, %v2084
      %2086 = vmatmul.f32.gmra.mxu0 %v2023
      %v2087 = vpop.f32.mrf.mxu0
      %v2088 = vadd.f32 %v1965, %v2087
      %2089 = vmatmul.f32.gmra.mxu0 %v2026
      %v2090 = vpop.f32.mrf.mxu0
      %v2091 = vadd.f32 %v1970, %v2090
      %2092 = vmatmul.f32.gmra.mxu0 %v2029
      %v2093 = vpop.f32.mrf.mxu0
      %v2094 = vadd.f32 %v1975, %v2093
      %2095 = vmatmul.f32.gmra.mxu0 %v2032
      %v2096 = vpop.f32.mrf.mxu0
      %v2097 = vadd.f32 %v1980, %v2096
      %2098 = vmatmul.f32.gmra.mxu0 %v2035
      %v2099 = vpop.f32.mrf.mxu0
      %v2100 = vadd.f32 %v1985, %v2099
      %2101 = vmatmul.f32.gmra.mxu0 %v2038
      %v2102 = vpop.f32.mrf.mxu0
      %v2103 = vadd.f32 %v1990, %v2102
      %2104 = vdwg.mxu0
      %v2105 = vmax.f32 %v2058, 0.0
      %v2106 = vmax.f32 %v2061, 0.0
      %v2107 = vmax.f32 %v2064, 0.0
      %v2108 = vmax.f32 %v2067, 0.0
      %v2109 = vmax.f32 %v2070, 0.0
      %v2110 = vmax.f32 %v2073, 0.0
      %v2111 = vmax.f32 %v2076, 0.0
      %v2112 = vmax.f32 %v2079, 0.0
      %v2113 = vmax.f32 %v2082, 0.0
      %v2114 = vmax.f32 %v2085, 0.0
      %v2115 = vmax.f32 %v2088, 0.0
      %v2116 = vmax.f32 %v2091, 0.0
      %v2117 = vmax.f32 %v2094, 0.0
      %v2118 = vmax.f32 %v2097, 0.0
      %v2119 = vmax.f32 %v2100, 0.0
      %v2120 = vmax.f32 %v2103, 0.0
      %v2121 = vmax.f32 %v2105, %v2113
      %v2122 = vmax.f32 %v2106, %v2114
      %v2123 = vmax.f32 %v2107, %v2115
      %v2124 = vmax.f32 %v2108, %v2116
      %v2125 = vmax.f32 %v2109, %v2117
      %v2126 = vmax.f32 %v2110, %v2118
      %v2127 = vmax.f32 %v2111, %v2119
      %v2128 = vmax.f32 %v2112, %v2120
      %v2129 = vld [vmem:[%s13] sm:$0xff]
      %v2130 = vld [vmem:[%s13 + $0x8] sm:$0xff]
      %v2131 = vld [vmem:[%s13 + $0x10] sm:$0xff]
      %v2132 = vld [vmem:[%s13 + $0x18] sm:$0xff]
      %v2133 = vld [vmem:[%s13 + $0x20] sm:$0xff]
      %v2134 = vld [vmem:[%s13 + $0x28] sm:$0xff]
      %v2135 = vld [vmem:[%s13 + $0x30] sm:$0xff]
      %v2136 = vld [vmem:[%s13 + $0x38] sm:$0xff]
      %v2137 = vld [vmem:[%s14] sm:$0xff]
      %v2138 = vld [vmem:[%s14 + $0x8] sm:$0xff]
      %v2139 = vld [vmem:[%s14 + $0x10] sm:$0xff]
      %v2140 = vld [vmem:[%s14 + $0x18] sm:$0xff]
      %v2141 = vld [vmem:[%s14 + $0x20] sm:$0xff]
      %v2142 = vld [vmem:[%s14 + $0x28] sm:$0xff]
      %v2143 = vld [vmem:[%s14 + $0x30] sm:$0xff]
      %v2144 = vld [vmem:[%s14 + $0x38] sm:$0xff]
      %2146 = vset.pattern.permute.xlu0 0
      %2147 = vperm.xlu0 %2146, %v2137
      %v2148 = vpop.permute.xlu0 %2147
      %2151 = vset.pattern.permute.xlu0 0
      %2152 = vperm.xlu0 %2151, %v2138
      %v2153 = vpop.permute.xlu0 %2152
      %2156 = vset.pattern.permute.xlu0 0
      %2157 = vperm.xlu0 %2156, %v2139
      %v2158 = vpop.permute.xlu0 %2157
      %2161 = vset.pattern.permute.xlu0 0
      %2162 = vperm.xlu0 %2161, %v2140
      %v2163 = vpop.permute.xlu0 %2162
      %2166 = vset.pattern.permute.xlu0 0
      %2167 = vperm.xlu0 %2166, %v2141
      %v2168 = vpop.permute.xlu0 %2167
      %2171 = vset.pattern.permute.xlu0 0
      %2172 = vperm.xlu0 %2171, %v2142
      %v2173 = vpop.permute.xlu0 %2172
      %2176 = vset.pattern.permute.xlu0 0
      %2177 = vperm.xlu0 %2176, %v2143
      %v2178 = vpop.permute.xlu0 %2177
      %2181 = vset.pattern.permute.xlu0 0
      %2182 = vperm.xlu0 %2181, %v2144
      %v2183 = vpop.permute.xlu0 %2182
      %v2186 = vsel %vm746, %v2129, 0
      %v2189 = vsel %vm746, %v2130, 0
      %v2192 = vsel %vm746, %v2131, 0
      %v2195 = vsel %vm746, %v2132, 0
      %v2198 = vsel %vm746, %v2133, 0
      %v2201 = vsel %vm746, %v2134, 0
      %v2204 = vsel %vm746, %v2135, 0
      %v2207 = vsel %vm746, %v2136, 0
      %2209 = vmatpush.msra.mxu0 0.0
      %2210 = vmatpush.msra.mxu0 0.0
      %2211 = vmatpush.msra.mxu0 0.0
      %2212 = vmatpush.msra.mxu0 0.0
      %2213 = vmatpush.msra.mxu0 0.0
      %2214 = vmatpush.msra.mxu0 0.0
      %2215 = vmatpush.msra.mxu0 0.0
      %2216 = vmatpush.msra.mxu0 0.0
      %2217 = vmatpush.msra.mxu0 %v2128
      %2218 = vmatpush.msra.mxu0 %v2127
      %2219 = vmatpush.msra.mxu0 %v2126
      %2220 = vmatpush.msra.mxu0 %v2125
      %2221 = vmatpush.msra.mxu0 %v2124
      %2222 = vmatpush.msra.mxu0 %v2123
      %2223 = vmatpush.msra.mxu0 %v2122
      %2224 = vmatpush.msra.mxu0 %v2121
      %2225 = vmatmul.f32.gmra.mxu0 %v2186
      %v2226 = vpop.f32.mrf.mxu0
      %v2227 = vadd.f32 %v2148, %v2226
      %2228 = vmatmul.f32.gmra.mxu0 %v2189
      %v2229 = vpop.f32.mrf.mxu0
      %v2230 = vadd.f32 %v2153, %v2229
      %2231 = vmatmul.f32.gmra.mxu0 %v2192
      %v2232 = vpop.f32.mrf.mxu0
      %v2233 = vadd.f32 %v2158, %v2232
      %2234 = vmatmul.f32.gmra.mxu0 %v2195
      %v2235 = vpop.f32.mrf.mxu0
      %v2236 = vadd.f32 %v2163, %v2235
      %2237 = vmatmul.f32.gmra.mxu0 %v2198
      %v2238 = vpop.f32.mrf.mxu0
      %v2239 = vadd.f32 %v2168, %v2238
      %2240 = vmatmul.f32.gmra.mxu0 %v2201
      %v2241 = vpop.f32.mrf.mxu0
      %v2242 = vadd.f32 %v2173, %v2241
      %2243 = vmatmul.f32.gmra.mxu0 %v2204
      %v2244 = vpop.f32.mrf.mxu0
      %v2245 = vadd.f32 %v2178, %v2244
      %2246 = vmatmul.f32.gmra.mxu0 %v2207
      %v2247 = vpop.f32.mrf.mxu0
      %v2248 = vadd.f32 %v2183, %v2247
      %2249 = vdwg.mxu0
      %v2250 = vmax.f32 %v2227, 0.0
      %v2251 = vmax.f32 %v2230, 0.0
      %v2252 = vmax.f32 %v2233, 0.0
      %v2253 = vmax.f32 %v2236, 0.0
      %v2254 = vmax.f32 %v2239, 0.0
      %v2255 = vmax.f32 %v2242, 0.0
      %v2256 = vmax.f32 %v2245, 0.0
      %v2257 = vmax.f32 %v2248, 0.0
      %s2258 = smul.u32 %s35, 4
      %v2259 = vlaneseq
      %v2260 = vand.u32 %v2259, 127
      %v2261 = vstv %s2258
      %v2262 = vadd.s32 %v2261, %v2260
      %vm2263 = vcmp.lt.s32.totalorder %v2262, 4
      %v2264 = vsel %vm2263, %v2250, -inf
      %v2265 = vsel %vm2263, %v2251, -inf
      %v2266 = vsel %vm2263, %v2252, -inf
      %v2267 = vsel %vm2263, %v2253, -inf
      %v2268 = vsel %vm2263, %v2254, -inf
      %v2269 = vsel %vm2263, %v2255, -inf
      %v2270 = vsel %vm2263, %v2256, -inf
      %v2271 = vsel %vm2263, %v2257, -inf
      %vm2272 = vcmask 31744
      %v2273 = vsel %vm2272, %v2264, -inf
      %2274 = vmax.xlane.f32.xlu0 %v2273
      %v2275 = vpop.xlane.xlu0 %2274
      %v2276 = vsel %vm2272, %v2265, -inf
      %2277 = vmax.xlane.f32.xlu0 %v2276
      %v2278 = vpop.xlane.xlu0 %2277
      %v2279 = vsel %vm2272, %v2266, -inf
      %2280 = vmax.xlane.f32.xlu0 %v2279
      %v2281 = vpop.xlane.xlu0 %2280
      %v2282 = vsel %vm2272, %v2267, -inf
      %2283 = vmax.xlane.f32.xlu0 %v2282
      %v2284 = vpop.xlane.xlu0 %2283
      %v2285 = vsel %vm2272, %v2268, -inf
      %2286 = vmax.xlane.f32.xlu0 %v2285
      %v2287 = vpop.xlane.xlu0 %2286
      %v2288 = vsel %vm2272, %v2269, -inf
      %2289 = vmax.xlane.f32.xlu0 %v2288
      %v2290 = vpop.xlane.xlu0 %2289
      %v2291 = vsel %vm2272, %v2270, -inf
      %2292 = vmax.xlane.f32.xlu0 %v2291
      %v2293 = vpop.xlane.xlu0 %2292
      %v2294 = vsel %vm2272, %v2271, -inf
      %2295 = vmax.xlane.f32.xlu0 %v2294
      %v2296 = vpop.xlane.xlu0 %2295
      %p2297 = scmp.eq.s32.totalorder %s35, 0
      // Predicated region
      $region97: #{tpu_custom_call.1} parent=95 // pred_check
        %p2298 = pneg %p2297
      $region98: #{tpu_custom_call.1} parent=95 // pred_check_branch
        %2300 = sbr.rel (%p2298) target = $region100
      $region99: #{tpu_custom_call.1} parent=95 // pred_region
        %vm2301 = vcmask 7168
        %2302 = vst.msk [vmem:[#allocation2] sm:$0xff] %vm2301, -inf
        %2303 = vst.msk [vmem:[#allocation2 + $0x8] sm:$0xff] %vm2301, -inf
        %2304 = vst.msk [vmem:[#allocation2 + $0x10] sm:$0xff] %vm2301, -inf
        %2305 = vst.msk [vmem:[#allocation2 + $0x18] sm:$0xff] %vm2301, -inf
        %2306 = vst.msk [vmem:[#allocation2 + $0x20] sm:$0xff] %vm2301, -inf
        %2307 = vst.msk [vmem:[#allocation2 + $0x28] sm:$0xff] %vm2301, -inf
        %2308 = vst.msk [vmem:[#allocation2 + $0x30] sm:$0xff] %vm2301, -inf
        %2309 = vst.msk [vmem:[#allocation2 + $0x38] sm:$0xff] %vm2301, -inf
      $region100: #{tpu_custom_call.1} parent=95 // pred_fallthru
        _
      %v2310 = vld [vmem:[#allocation2] sm:$0xff]
      %v2311 = vld [vmem:[#allocation2 + $0x8] sm:$0xff]
      %v2312 = vld [vmem:[#allocation2 + $0x10] sm:$0xff]
      %v2313 = vld [vmem:[#allocation2 + $0x18] sm:$0xff]
      %v2314 = vld [vmem:[#allocation2 + $0x20] sm:$0xff]
      %v2315 = vld [vmem:[#allocation2 + $0x28] sm:$0xff]
      %v2316 = vld [vmem:[#allocation2 + $0x30] sm:$0xff]
      %v2317 = vld [vmem:[#allocation2 + $0x38] sm:$0xff]
      %v2318 = vmax.f32 %v2310, %v2275
      %v2319 = vmax.f32 %v2311, %v2278
      %v2320 = vmax.f32 %v2312, %v2281
      %v2321 = vmax.f32 %v2313, %v2284
      %v2322 = vmax.f32 %v2314, %v2287
      %v2323 = vmax.f32 %v2315, %v2290
      %v2324 = vmax.f32 %v2316, %v2293
      %v2325 = vmax.f32 %v2317, %v2296
      %vm2326 = vcmask 7168
      %2327 = vst.msk [vmem:[#allocation2] sm:$0xff] %vm2326, %v2318
      %2328 = vst.msk [vmem:[#allocation2 + $0x8] sm:$0xff] %vm2326, %v2319
      %2329 = vst.msk [vmem:[#allocation2 + $0x10] sm:$0xff] %vm2326, %v2320
      %2330 = vst.msk [vmem:[#allocation2 + $0x18] sm:$0xff] %vm2326, %v2321
      %2331 = vst.msk [vmem:[#allocation2 + $0x20] sm:$0xff] %vm2326, %v2322
      %2332 = vst.msk [vmem:[#allocation2 + $0x28] sm:$0xff] %vm2326, %v2323
      %2333 = vst.msk [vmem:[#allocation2 + $0x30] sm:$0xff] %vm2326, %v2324
      %2334 = vst.msk [vmem:[#allocation2 + $0x38] sm:$0xff] %vm2326, %v2325
      // Predicated region
      $region101: #{tpu_custom_call.1} parent=95 // pred_check
        %p2335 = pneg %p2297
      $region102: #{tpu_custom_call.1} parent=95 // pred_check_branch
        %2337 = sbr.rel (%p2335) target = $region104
      $region103: #{tpu_custom_call.1} parent=95 // pred_region
        %v2338 = vld [vmem:[#allocation2] sm:$0xff]
        %v2339 = vld [vmem:[#allocation2 + $0x8] sm:$0xff]
        %v2340 = vld [vmem:[#allocation2 + $0x10] sm:$0xff]
        %v2341 = vld [vmem:[#allocation2 + $0x18] sm:$0xff]
        %v2342 = vld [vmem:[#allocation2 + $0x20] sm:$0xff]
        %v2343 = vld [vmem:[#allocation2 + $0x28] sm:$0xff]
        %v2344 = vld [vmem:[#allocation2 + $0x30] sm:$0xff]
        %v2345 = vld [vmem:[#allocation2 + $0x38] sm:$0xff]
        %v2346 = vld [vmem:[%s15] sm:$0xff]
        %v2347 = vld [vmem:[%s15 + $0x8] sm:$0xff]
        %v2348 = vld [vmem:[%s15 + $0x10] sm:$0xff]
        %v2349 = vld [vmem:[%s15 + $0x18] sm:$0xff]
        %v2350 = vld [vmem:[%s15 + $0x20] sm:$0xff]
        %v2351 = vld [vmem:[%s15 + $0x28] sm:$0xff]
        %v2352 = vld [vmem:[%s15 + $0x30] sm:$0xff]
        %v2353 = vld [vmem:[%s15 + $0x38] sm:$0xff]
        %v2354 = vld [vmem:[%s16] sm:$0xff]
        %v2355 = vld [vmem:[%s16 + $0x8] sm:$0xff]
        %v2356 = vld [vmem:[%s16 + $0x10] sm:$0xff]
        %v2357 = vld [vmem:[%s16 + $0x18] sm:$0xff]
        %v2358 = vld [vmem:[%s16 + $0x20] sm:$0xff]
        %v2359 = vld [vmem:[%s16 + $0x28] sm:$0xff]
        %v2360 = vld [vmem:[%s16 + $0x30] sm:$0xff]
        %v2361 = vld [vmem:[%s16 + $0x38] sm:$0xff]
        %v2363 = vsel %vm746, %v2346, 0
        %v2366 = vsel %vm746, %v2347, 0
        %v2369 = vsel %vm746, %v2348, 0
        %v2372 = vsel %vm746, %v2349, 0
        %v2375 = vsel %vm746, %v2350, 0
        %v2378 = vsel %vm746, %v2351, 0
        %v2381 = vsel %vm746, %v2352, 0
        %v2384 = vsel %vm746, %v2353, 0
        %2386 = vmatpush.msra.mxu0 0.0
        %2387 = vmatpush.msra.mxu0 0.0
        %2388 = vmatpush.msra.mxu0 0.0
        %2389 = vmatpush.msra.mxu0 0.0
        %2390 = vmatpush.msra.mxu0 0.0
        %2391 = vmatpush.msra.mxu0 0.0
        %2392 = vmatpush.msra.mxu0 0.0
        %2393 = vmatpush.msra.mxu0 0.0
        %2394 = vmatpush.msra.mxu0 %v2345
        %2395 = vmatpush.msra.mxu0 %v2344
        %2396 = vmatpush.msra.mxu0 %v2343
        %2397 = vmatpush.msra.mxu0 %v2342
        %2398 = vmatpush.msra.mxu0 %v2341
        %2399 = vmatpush.msra.mxu0 %v2340
        %2400 = vmatpush.msra.mxu0 %v2339
        %2401 = vmatpush.msra.mxu0 %v2338
        %2402 = vmatmul.f32.gmra.mxu0 %v2363
        %v2403 = vpop.f32.mrf.mxu0
        %v2404 = vadd.f32 %v2354, %v2403
        %2405 = vmatmul.f32.gmra.mxu0 %v2366
        %v2406 = vpop.f32.mrf.mxu0
        %v2407 = vadd.f32 %v2355, %v2406
        %2408 = vmatmul.f32.gmra.mxu0 %v2369
        %v2409 = vpop.f32.mrf.mxu0
        %v2410 = vadd.f32 %v2356, %v2409
        %2411 = vmatmul.f32.gmra.mxu0 %v2372
        %v2412 = vpop.f32.mrf.mxu0
        %v2413 = vadd.f32 %v2357, %v2412
        %2414 = vmatmul.f32.gmra.mxu0 %v2375
        %v2415 = vpop.f32.mrf.mxu0
        %v2416 = vadd.f32 %v2358, %v2415
        %2417 = vmatmul.f32.gmra.mxu0 %v2378
        %v2418 = vpop.f32.mrf.mxu0
        %v2419 = vadd.f32 %v2359, %v2418
        %2420 = vmatmul.f32.gmra.mxu0 %v2381
        %v2421 = vpop.f32.mrf.mxu0
        %v2422 = vadd.f32 %v2360, %v2421
        %2423 = vmatmul.f32.gmra.mxu0 %v2384
        %v2424 = vpop.f32.mrf.mxu0
        %v2425 = vadd.f32 %v2361, %v2424
        %2426 = vdwg.mxu0
        %v2427 = vmax.f32 %v2404, 0.0
        %v2428 = vmax.f32 %v2407, 0.0
        %v2429 = vmax.f32 %v2410, 0.0
        %v2430 = vmax.f32 %v2413, 0.0
        %v2431 = vmax.f32 %v2416, 0.0
        %v2432 = vmax.f32 %v2419, 0.0
        %v2433 = vmax.f32 %v2422, 0.0
        %v2434 = vmax.f32 %v2425, 0.0
        %v2435 = vld [vmem:[%s17] sm:$0xff]
        %v2436 = vld [vmem:[%s17 + $0x8] sm:$0xff]
        %v2437 = vld [vmem:[%s18] sm:$0xff]
        %v2438 = vld [vmem:[%s18 + $0x8] sm:$0xff]
        %v2440 = vsel %vm746, %v2435, 0
        %v2443 = vsel %vm746, %v2436, 0
        %2445 = vmatpush.msra.mxu0 0.0
        %2446 = vmatpush.msra.mxu0 0.0
        %2447 = vmatpush.msra.mxu0 0.0
        %2448 = vmatpush.msra.mxu0 0.0
        %2449 = vmatpush.msra.mxu0 0.0
        %2450 = vmatpush.msra.mxu0 0.0
        %2451 = vmatpush.msra.mxu0 0.0
        %2452 = vmatpush.msra.mxu0 0.0
        %2453 = vmatpush.msra.mxu0 %v2434
        %2454 = vmatpush.msra.mxu0 %v2433
        %2455 = vmatpush.msra.mxu0 %v2432
        %2456 = vmatpush.msra.mxu0 %v2431
        %2457 = vmatpush.msra.mxu0 %v2430
        %2458 = vmatpush.msra.mxu0 %v2429
        %2459 = vmatpush.msra.mxu0 %v2428
        %2460 = vmatpush.msra.mxu0 %v2427
        %2461 = vmatmul.f32.gmra.mxu0 %v2440
        %v2462 = vpop.f32.mrf.mxu0
        %v2463 = vadd.f32 %v2437, %v2462
        %2464 = vmatmul.f32.gmra.mxu0 %v2443
        %v2465 = vpop.f32.mrf.mxu0
        %v2466 = vadd.f32 %v2438, %v2465
        %2467 = vdwg.mxu0
        %2468 = vst.msk [vmem:[%s625] sm:$0xff] %vm2326, %v2463
        %2469 = vst.msk [vmem:[%s625 + $0x8] sm:$0xff] %vm2326, %v2466
      $region104: #{tpu_custom_call.1} parent=95 // pred_fallthru
        _
      %p2470 = scmp.lt.s32.totalorder %s34, 1
      %s2471 = scalar_select %p2470, %s34, 1
      %s2472 = smul.addr %s2471, 2
      %s2473 = smul.addr %s2472, 8
      %s2474 = scalar_lea.vmem %s19, %s2473
      // Predicated region
      $region105: #{tpu_custom_call.1} parent=95 // pred_check
        %p2475 = pneg %p466
      $region106: #{tpu_custom_call.1} parent=95 // pred_check_branch
        %2477 = sbr.rel (%p2475) target = $region108
      $region107: #{tpu_custom_call.1} parent=95 // pred_region
        _
      $region108: #{tpu_custom_call.1} parent=95 // pred_fallthru
        _
    $region96: #{tpu_custom_call.1} parent=5 // pred_fallthru
      _
    %p2478 = scmp.le.s32.totalorder 2, %s25
    // Predicated region
    $region109: #{tpu_custom_call.1} parent=5 // pred_check
      %p2479 = pneg %p2478
    $region110: #{tpu_custom_call.1} parent=5 // pred_check_branch
      %2481 = sbr.rel (%p2479) target = $region112
    $region111: #{tpu_custom_call.1} parent=5 // pred_region
      %s2482 = ssub.s32 %s25, 2
      // Predicated region
      $region113: #{tpu_custom_call.1} parent=111 // pred_check
        %p2483 = pneg %p472
      $region114: #{tpu_custom_call.1} parent=111 // pred_check_branch
        %2485 = sbr.rel (%p2483) target = $region116
      $region115: #{tpu_custom_call.1} parent=111 // pred_region
        %p2486 = scmp.lt.s32.totalorder %s36, 1
        %s2487 = scalar_select %p2486, %s36, 1
        %s2488 = smul.addr %s2487, 2
        %s2489 = smul.addr %s2488, 8
        %s2490 = scalar_lea.vmem %s19, %s2489
      $region116: #{tpu_custom_call.1} parent=111 // pred_fallthru
        _
    $region112: #{tpu_custom_call.1} parent=5 // pred_fallthru
      _
  $region6: #{tpu_custom_call.1} parent=0 // loop_footer
    %s29 = sadd.s32 1, %s25
  $region7: #{tpu_custom_call.1} parent=0 // loop_footer_branch
    %24 = sbr.rel target = $region3
  $region8: #{tpu_custom_call.1} parent=0 // loop_exit
    _

</llo_original>
